<compile_context>
chip_gen: v6e
topology: v6e:2x2x1
jax: 0.10.0
libtpu: 0.0.40
codegen_flags: <defaults>
</compile_context>

<pallas_src>
import jax
import jax.numpy as jnp
from jax.experimental import pallas as pl
from jax.experimental.pallas import tpu as pltpu

_MASK_VALUE = -1e30  # large finite negative instead of -inf (avoids NaN on all-masked rows)


def _round_up(x: int, m: int) -> int:
    return (x + m - 1) // m * m


def _attention_kernel(tgt_ref, enc_ref, mask_ref, w_src_ref, w_t_ref, w_c_ref,
                      out_ref, weights_ref,
                      q_scr, m_scr, l_scr, acc_scr, s_scr):
    t_idx = pl.program_id(1)
    num_t = pl.num_programs(1)
    t_tile = enc_ref.shape[0]

    @pl.when(t_idx == 0)
    def _init():
        # Luong "general" score: tgt^T W_src enc == (tgt @ W_src) . enc
        # -> project the (small) decoder state once per batch tile.
        q_scr[...] = jnp.dot(tgt_ref[...].astype(jnp.float32),
                             w_src_ref[...].astype(jnp.float32),
                             preferred_element_type=jnp.float32)
        m_scr[...] = jnp.full(m_scr.shape, _MASK_VALUE, dtype=jnp.float32)
        l_scr[...] = jnp.zeros(l_scr.shape, dtype=jnp.float32)
        acc_scr[...] = jnp.zeros(acc_scr.shape, dtype=jnp.float32)

    enc = enc_ref[...].astype(jnp.float32)            # (t_tile, b_tile, d_in), native [T,B,D]
    q = q_scr[...]                                    # (b_tile, d_in)

    # ---- scores for this block of source positions ----
    s_tb = jnp.sum(enc * q[None, :, :], axis=-1)      # (t_tile, b_tile) lane-reduce
    s_bt = s_tb.T                                     # (b_tile, t_tile) small XLU transpose
    s_bt = jnp.where(mask_ref[...] != 0, _MASK_VALUE, s_bt)

    # stash raw masked scores; converted to exact softmax weights in the finalize step
    col = pl.multiple_of(t_idx * t_tile, 128)
    s_scr[:, pl.ds(col, t_tile)] = s_bt

    # ---- online (flash-style) softmax accumulation of the context vector ----
    m_prev = m_scr[...]                                               # (b_tile, 1)
    m_new = jnp.maximum(m_prev, jnp.max(s_bt, axis=-1, keepdims=True))
    alpha = jnp.exp(m_prev - m_new)
    p_bt = jnp.exp(s_bt - m_new)                                      # (b_tile, t_tile)
    l_scr[...] = alpha * l_scr[...] + jnp.sum(p_bt, axis=-1, keepdims=True)
    acc_scr[...] = alpha * acc_scr[...] + jnp.sum(p_bt.T[:, :, None] * enc, axis=0)
    m_scr[...] = m_new

    @pl.when(t_idx == num_t - 1)
    def _finalize():
        l = l_scr[...]
        inv_l = pl.reciprocal(l, approx=True)          # EUP seed ...
        inv_l = inv_l * (2.0 - l * inv_l)              # ... + one Newton step -> ~f32 exact
        ctx = acc_scr[...] * inv_l                     # (b_tile, d_in)

        # exact softmax weights from the stashed raw scores (lane-dense output slab)
        weights_ref[...] = (jnp.exp(s_scr[...] - m_scr[...]) * inv_l
                            ).astype(weights_ref.dtype)

        # tanh(cat([tgt, ctx]) @ W_cph^T) == tanh(tgt @ W_t^T + ctx @ W_c^T)
        out = jnp.tanh(
            jnp.dot(tgt_ref[...].astype(jnp.float32), w_t_ref[...].astype(jnp.float32),
                    preferred_element_type=jnp.float32)
            + jnp.dot(ctx, w_c_ref[...].astype(jnp.float32),
                      preferred_element_type=jnp.float32))
        out_ref[...] = out.astype(out_ref.dtype)


def attention_layer(tgt_input, encoder_out, src_mask, w_src, w_cph):
    """encoder_out comes (and stays) in PyTorch layout [T, B, D_in]."""
    T, B, d_in = encoder_out.shape
    d_out = tgt_input.shape[1]

    # Split + pre-transpose the output projection (no in-kernel concat / weight transpose).
    w_t_T = jnp.transpose(w_cph[:, :d_out])            # (d_out, d_out): multiplies tgt
    w_c_T = jnp.transpose(w_cph[:, d_out:])            # (d_in,  d_out): multiplies ctx

    # ---- tiling ----
    b_tile = 8                                          # sublane-aligned batch tile
    b_pad = _round_up(B, b_tile)
    # Source-time tile: lane-aligned, sized so the double-buffered encoder tile stays well
    # inside scoped VMEM (v7x only has 64 MiB physical VMEM).
    tile_budget_bytes = 8 * 1024 * 1024
    bytes_per_t_row = b_tile * d_in * 4
    t_cap = max(128, (tile_budget_bytes // (2 * bytes_per_t_row)) // 128 * 128)
    t_tile = min(_round_up(min(max(T, 1), 512), 128), t_cap)
    t_pad = _round_up(T, t_tile)
    num_b, num_t = b_pad // b_tile, t_pad // t_tile

    # ---- pad to tile boundaries (padded positions are masked out) ----
    enc_p = encoder_out
    if (t_pad, b_pad) != (T, B):
        enc_p = jnp.zeros((t_pad, b_pad, d_in), encoder_out.dtype).at[:T, :B, :].set(encoder_out)
    tgt_p = tgt_input
    if b_pad != B:
        tgt_p = jnp.zeros((b_pad, d_out), tgt_input.dtype).at[:B, :].set(tgt_input)
    mask_p = jnp.ones((b_pad, t_pad), jnp.int32).at[:B, :T].set(src_mask.astype(jnp.int32))

    f32 = jnp.float32
    grid_spec = pltpu.PrefetchScalarGridSpec(
        num_scalar_prefetch=0,
        grid=(num_b, num_t),
        in_specs=[
            pl.BlockSpec((b_tile, d_out), lambda b, t: (b, 0)),            # tgt
            pl.BlockSpec((t_tile, b_tile, d_in), lambda b, t: (t, b, 0)),  # enc, native [T,B,D]
            pl.BlockSpec((b_tile, t_tile), lambda b, t: (b, t)),           # mask
            pl.BlockSpec((d_out, d_in), lambda b, t: (0, 0)),              # W_src
            pl.BlockSpec((d_out, d_out), lambda b, t: (0, 0)),             # W_t^T
            pl.BlockSpec((d_in, d_out), lambda b, t: (0, 0)),              # W_c^T
        ],
        out_specs=[
            pl.BlockSpec((b_tile, d_out), lambda b, t: (b, 0)),            # attn_out
            pl.BlockSpec((b_tile, t_pad), lambda b, t: (b, 0)),            # attn_weights
        ],
        scratch_shapes=[
            pltpu.VMEM((b_tile, d_in), f32),    # q = tgt @ W_src
            pltpu.VMEM((b_tile, 1), f32),       # running max m
            pltpu.VMEM((b_tile, 1), f32),       # running sum l
            pltpu.VMEM((b_tile, d_in), f32),    # running (unnormalized) context
            pltpu.VMEM((b_tile, t_pad), f32),   # stashed raw scores -> exact softmax weights
        ],
    )

    out_pad, w_pad = pl.pallas_call(
        _attention_kernel,
        out_shape=(jax.ShapeDtypeStruct((b_pad, d_out), f32),
                   jax.ShapeDtypeStruct((b_pad, t_pad), f32)),
        grid_spec=grid_spec,
        compiler_params=pltpu.CompilerParams(
            dimension_semantics=("parallel", "arbitrary"),   # batch across cores; time = reduction
            vmem_limit_bytes=32 * 1024 * 1024),
    )(tgt_p, enc_p, mask_p, w_src, w_t_T, w_c_T)

    return out_pad[:B], w_pad[:B, :T]


def _reference(tgt_input, encoder_out, src_mask, w_src, w_cph):
    enc = jnp.transpose(encoder_out, (1, 0, 2))                 # (B, T, D_in)
    proj = jnp.einsum('bti,oi->bto', enc, w_src)                # (B, T, D_out)
    scores = jnp.einsum('bo,bto->bt', tgt_input, proj)          # (B, T)
    scores = jnp.where(src_mask, -jnp.inf, scores)
    weights = jax.nn.softmax(scores, axis=-1)
    ctx = jnp.einsum('bt,bti->bi', weights, enc)
    cph = jnp.concatenate([tgt_input, ctx], axis=1)
    attn_out = jnp.tanh(cph @ w_cph.T)
    return attn_out, weights


if __name__ == "__main__":
    B, T = 2, 8
    D_in, D_out = 32, 32

    key = jax.random.PRNGKey(0)
    k1, k2, k3, k4 = jax.random.split(key, 4)

    tgt_input = jax.random.normal(k1, (B, D_out), dtype=jnp.float32)
    encoder_out = jax.random.normal(k2, (T, B, D_in), dtype=jnp.float32)

    # deterministic "nn.Linear" weights (bias=False)
    w_src = jax.random.normal(k3, (D_out, D_in), dtype=jnp.float32) * 0.1
    w_cph = jax.random.normal(k4, (D_out, D_out + D_in), dtype=jnp.float32) * 0.1

    # mask out the last 2 source positions of batch element 1 (True = padded)
    src_mask = jnp.zeros((B, T), dtype=jnp.bool_).at[1, -2:].set(True)

    attn_out, attn_weights = attention_layer(tgt_input, encoder_out, src_mask, w_src, w_cph)
    jax.block_until_ready((attn_out, attn_weights))

    ref_out, ref_w = _reference(tgt_input, encoder_out, src_mask, w_src, w_cph)
    assert attn_out.shape == (B, D_out) and attn_weights.shape == (B, T)
    assert jnp.allclose(attn_out, ref_out, atol=1e-4, rtol=1e-4)
    assert jnp.allclose(attn_weights, ref_w, atol=1e-4, rtol=1e-4)

    print("KERNEL_OK")
</pallas_src>

<mosaic_0001>
module attributes {stable_mosaic.version = 11 : i64} {
  func.func @_attention_kernel(%arg0: i32, %arg1: i32, %arg2: memref<8x32xf32, #tpu.memory_space<vmem>>, %arg3: memref<128x8x32xf32, #tpu.memory_space<vmem>>, %arg4: memref<8x128xi32, #tpu.memory_space<vmem>>, %arg5: memref<32x32xf32, #tpu.memory_space<vmem>>, %arg6: memref<32x32xf32, #tpu.memory_space<vmem>>, %arg7: memref<32x32xf32, #tpu.memory_space<vmem>>, %arg8: memref<8x32xf32, #tpu.memory_space<vmem>>, %arg9: memref<8x128xf32, #tpu.memory_space<vmem>>, %arg10: memref<8x32xf32, #tpu.memory_space<vmem>>, %arg11: memref<8x1xf32, #tpu.memory_space<vmem>>, %arg12: memref<8x1xf32, #tpu.memory_space<vmem>>, %arg13: memref<8x32xf32, #tpu.memory_space<vmem>>, %arg14: memref<8x128xf32, #tpu.memory_space<vmem>>) attributes {dimension_semantics = [#tpu.dimension_semantics<parallel>, #tpu.dimension_semantics<arbitrary>], iteration_bounds = array<i64: 1, 1>, scalar_prefetch = 0 : i64, scratch_operands = 5 : i64, tpu.core_type = #tpu.core_type<tc>, window_params = [{transform_indices = @transform_0, window_bounds = array<i64: 8, 32>}, {transform_indices = @transform_1, window_bounds = array<i64: 128, 8, 32>}, {transform_indices = @transform_2, window_bounds = array<i64: 8, 128>}, {pipeline_mode = #tpu.pipeline_mode<synchronous>, transform_indices = @transform_3, window_bounds = array<i64: 32, 32>}, {pipeline_mode = #tpu.pipeline_mode<synchronous>, transform_indices = @transform_4, window_bounds = array<i64: 32, 32>}, {pipeline_mode = #tpu.pipeline_mode<synchronous>, transform_indices = @transform_5, window_bounds = array<i64: 32, 32>}, {transform_indices = @transform_6, window_bounds = array<i64: 8, 32>}, {transform_indices = @transform_7, window_bounds = array<i64: 8, 128>}]} {
    %c0_i32 = arith.constant 0 : i32
    %0 = arith.cmpi eq, %arg1, %c0_i32 : i32
    %1 = arith.extui %0 : i1 to i32
    %c0_i32_0 = arith.constant 0 : i32
    %2 = arith.cmpi ne, %1, %c0_i32_0 : i32
    scf.if %2 {
      %c0_27 = arith.constant 0 : index
      %c0_28 = arith.constant 0 : index
      %48 = vector.load %arg2[%c0_27, %c0_28] : memref<8x32xf32, #tpu.memory_space<vmem>>, vector<8x32xf32>
      %c0_29 = arith.constant 0 : index
      %c0_30 = arith.constant 0 : index
      %49 = vector.load %arg5[%c0_29, %c0_30] : memref<32x32xf32, #tpu.memory_space<vmem>>, vector<32x32xf32>
      %cst_31 = arith.constant dense<0.000000e+00> : vector<8x32xf32>
      %50 = tpu.matmul %48, %49, %cst_31 {dimension_numbers = #tpu.dot_dimension_numbers<[1], [0], [0], [1], [0, 0, 1, 1], [], []>} : vector<8x32xf32>, vector<32x32xf32>, vector<8x32xf32> -> vector<8x32xf32>
      %c0_32 = arith.constant 0 : index
      %c0_33 = arith.constant 0 : index
      %51 = vector.load %arg10[%c0_32, %c0_33] : memref<8x32xf32, #tpu.memory_space<vmem>>, vector<8x32xf32>
      tpu.vector_store %arg10[%c0_32, %c0_33], %50 {strides = array<i32>} : memref<8x32xf32, #tpu.memory_space<vmem>>, vector<8x32xf32>,
      %cst_34 = arith.constant -1.000000e+30 : f32
      %52 = vector.broadcast %cst_34 : f32 to vector<8x1xf32>
      %c0_35 = arith.constant 0 : index
      %c0_36 = arith.constant 0 : index
      %53 = vector.load %arg11[%c0_35, %c0_36] : memref<8x1xf32, #tpu.memory_space<vmem>>, vector<8x1xf32>
      tpu.vector_store %arg11[%c0_35, %c0_36], %52 {strides = array<i32>} : memref<8x1xf32, #tpu.memory_space<vmem>>, vector<8x1xf32>,
      %cst_37 = arith.constant 0.000000e+00 : f32
      %54 = vector.broadcast %cst_37 : f32 to vector<8x1xf32>
      %c0_38 = arith.constant 0 : index
      %c0_39 = arith.constant 0 : index
      %55 = vector.load %arg12[%c0_38, %c0_39] : memref<8x1xf32, #tpu.memory_space<vmem>>, vector<8x1xf32>
      tpu.vector_store %arg12[%c0_38, %c0_39], %54 {strides = array<i32>} : memref<8x1xf32, #tpu.memory_space<vmem>>, vector<8x1xf32>,
      %cst_40 = arith.constant 0.000000e+00 : f32
      %56 = vector.broadcast %cst_40 : f32 to vector<8x32xf32>
      %c0_41 = arith.constant 0 : index
      %c0_42 = arith.constant 0 : index
      %57 = vector.load %arg13[%c0_41, %c0_42] : memref<8x32xf32, #tpu.memory_space<vmem>>, vector<8x32xf32>
      tpu.vector_store %arg13[%c0_41, %c0_42], %56 {strides = array<i32>} : memref<8x32xf32, #tpu.memory_space<vmem>>, vector<8x32xf32>,
    } else {
    }
    %c0 = arith.constant 0 : index
    %c0_1 = arith.constant 0 : index
    %c0_2 = arith.constant 0 : index
    %3 = vector.load %arg3[%c0, %c0_1, %c0_2] : memref<128x8x32xf32, #tpu.memory_space<vmem>>, vector<128x8x32xf32>
    %c0_3 = arith.constant 0 : index
    %c0_4 = arith.constant 0 : index
    %4 = vector.load %arg10[%c0_3, %c0_4] : memref<8x32xf32, #tpu.memory_space<vmem>>, vector<8x32xf32>
    %5 = vector.shape_cast %4 : vector<8x32xf32> to vector<1x8x32xf32>
    %6 = vector.broadcast %5 : vector<1x8x32xf32> to vector<128x8x32xf32>
    %7 = arith.mulf %3, %6 : vector<128x8x32xf32>
    %cst = arith.constant dense<0.000000e+00> : vector<128x8xf32>
    %8 = vector.multi_reduction <add>, %7, %cst [2] : vector<128x8x32xf32> to vector<128x8xf32>
    %9 = tpu.transpose %8, [1, 0] : vector<128x8xf32> -> vector<8x128xf32>
    %c0_5 = arith.constant 0 : index
    %c0_6 = arith.constant 0 : index
    %10 = vector.load %arg4[%c0_5, %c0_6] : memref<8x128xi32, #tpu.memory_space<vmem>>, vector<8x128xi32>
    %c0_i32_7 = arith.constant 0 : i32
    %11 = vector.broadcast %c0_i32_7 : i32 to vector<8x128xi32>
    %12 = arith.cmpi ne, %10, %11 : vector<8x128xi32>
    %cst_8 = arith.constant -1.000000e+30 : f32
    %13 = vector.broadcast %cst_8 : f32 to vector<8x128xf32>
    %14 = arith.select %12, %13, %9 : vector<8x128xi1>, vector<8x128xf32>
    %c128_i32 = arith.constant 128 : i32
    %15 = arith.muli %arg1, %c128_i32 : i32
    %16 = tpu.assume_multiple %15, 128 : i32
    %c0_9 = arith.constant 0 : index
    %17 = arith.index_cast %16 : i32 to index
    %18 = vector.load %arg14[%c0_9, %17] : memref<8x128xf32, #tpu.memory_space<vmem>>, vector<8x128xf32>
    tpu.vector_store %arg14[%c0_9, %17], %14 {strides = array<i32>} : memref<8x128xf32, #tpu.memory_space<vmem>>, vector<8x128xf32>,
    %c0_10 = arith.constant 0 : index
    %c0_11 = arith.constant 0 : index
    %19 = vector.load %arg11[%c0_10, %c0_11] : memref<8x1xf32, #tpu.memory_space<vmem>>, vector<8x1xf32>
    %cst_12 = arith.constant dense<0xFF800000> : vector<8xf32>
    %20 = vector.multi_reduction <maximumf>, %14, %cst_12 [1] : vector<8x128xf32> to vector<8xf32>
    %21 = vector.shape_cast %20 : vector<8xf32> to vector<8x1xf32>
    %22 = arith.maximumf %19, %21 : vector<8x1xf32>
    %23 = arith.subf %19, %22 : vector<8x1xf32>
    %24 = math.exp %23 : vector<8x1xf32>
    %25 = vector.broadcast %22 : vector<8x1xf32> to vector<8x128xf32>
    %26 = arith.subf %14, %25 : vector<8x128xf32>
    %27 = math.exp %26 : vector<8x128xf32>
    %c0_13 = arith.constant 0 : index
    %c0_14 = arith.constant 0 : index
    %28 = vector.load %arg12[%c0_13, %c0_14] : memref<8x1xf32, #tpu.memory_space<vmem>>, vector<8x1xf32>
    %29 = arith.mulf %24, %28 : vector<8x1xf32>
    %cst_15 = arith.constant dense<0.000000e+00> : vector<8xf32>
    %30 = vector.multi_reduction <add>, %27, %cst_15 [1] : vector<8x128xf32> to vector<8xf32>
    %31 = vector.shape_cast %30 : vector<8xf32> to vector<8x1xf32>
    %32 = arith.addf %29, %31 : vector<8x1xf32>
    %c0_16 = arith.constant 0 : index
    %c0_17 = arith.constant 0 : index
    %33 = vector.load %arg12[%c0_16, %c0_17] : memref<8x1xf32, #tpu.memory_space<vmem>>, vector<8x1xf32>
    tpu.vector_store %arg12[%c0_16, %c0_17], %32 {strides = array<i32>} : memref<8x1xf32, #tpu.memory_space<vmem>>, vector<8x1xf32>,
    %c0_18 = arith.constant 0 : index
    %c0_19 = arith.constant 0 : index
    %34 = vector.load %arg13[%c0_18, %c0_19] : memref<8x32xf32, #tpu.memory_space<vmem>>, vector<8x32xf32>
    %35 = vector.broadcast %24 : vector<8x1xf32> to vector<8x32xf32>
    %36 = arith.mulf %35, %34 : vector<8x32xf32>
    %37 = tpu.transpose %27, [1, 0] : vector<8x128xf32> -> vector<128x8xf32>
    %38 = vector.shape_cast %37 : vector<128x8xf32> to vector<128x8x1xf32>
    %39 = vector.broadcast %38 : vector<128x8x1xf32> to vector<128x8x32xf32>
    %40 = arith.mulf %39, %3 : vector<128x8x32xf32>
    %cst_20 = arith.constant dense<0.000000e+00> : vector<8x32xf32>
    %41 = vector.multi_reduction <add>, %40, %cst_20 [0] : vector<128x8x32xf32> to vector<8x32xf32>
    %42 = arith.addf %36, %41 : vector<8x32xf32>
    %c0_21 = arith.constant 0 : index
    %c0_22 = arith.constant 0 : index
    %43 = vector.load %arg13[%c0_21, %c0_22] : memref<8x32xf32, #tpu.memory_space<vmem>>, vector<8x32xf32>
    tpu.vector_store %arg13[%c0_21, %c0_22], %42 {strides = array<i32>} : memref<8x32xf32, #tpu.memory_space<vmem>>, vector<8x32xf32>,
    %c0_23 = arith.constant 0 : index
    %c0_24 = arith.constant 0 : index
    %44 = vector.load %arg11[%c0_23, %c0_24] : memref<8x1xf32, #tpu.memory_space<vmem>>, vector<8x1xf32>
    tpu.vector_store %arg11[%c0_23, %c0_24], %22 {strides = array<i32>} : memref<8x1xf32, #tpu.memory_space<vmem>>, vector<8x1xf32>,
    %c0_i32_25 = arith.constant 0 : i32
    %45 = arith.cmpi eq, %arg1, %c0_i32_25 : i32
    %46 = arith.extui %45 : i1 to i32
    %c0_i32_26 = arith.constant 0 : i32
    %47 = arith.cmpi ne, %46, %c0_i32_26 : i32
    scf.if %47 {
      %c0_27 = arith.constant 0 : index
      %c0_28 = arith.constant 0 : index
      %48 = vector.load %arg12[%c0_27, %c0_28] : memref<8x1xf32, #tpu.memory_space<vmem>>, vector<8x1xf32>
      %49 = tpu.reciprocal %48 {approx = true} : vector<8x1xf32> -> vector<8x1xf32>
      %50 = arith.mulf %48, %49 : vector<8x1xf32>
      %cst_29 = arith.constant 2.000000e+00 : f32
      %51 = vector.broadcast %cst_29 : f32 to vector<8x1xf32>
      %52 = arith.subf %51, %50 : vector<8x1xf32>
      %53 = arith.mulf %49, %52 : vector<8x1xf32>
      %c0_30 = arith.constant 0 : index
      %c0_31 = arith.constant 0 : index
      %54 = vector.load %arg13[%c0_30, %c0_31] : memref<8x32xf32, #tpu.memory_space<vmem>>, vector<8x32xf32>
      %55 = vector.broadcast %53 : vector<8x1xf32> to vector<8x32xf32>
      %56 = arith.mulf %54, %55 : vector<8x32xf32>
      %c0_32 = arith.constant 0 : index
      %c0_33 = arith.constant 0 : index
      %57 = vector.load %arg14[%c0_32, %c0_33] : memref<8x128xf32, #tpu.memory_space<vmem>>, vector<8x128xf32>
      %c0_34 = arith.constant 0 : index
      %c0_35 = arith.constant 0 : index
      %58 = vector.load %arg11[%c0_34, %c0_35] : memref<8x1xf32, #tpu.memory_space<vmem>>, vector<8x1xf32>
      %59 = vector.broadcast %58 : vector<8x1xf32> to vector<8x128xf32>
      %60 = arith.subf %57, %59 : vector<8x128xf32>
      %61 = math.exp %60 : vector<8x128xf32>
      %62 = vector.broadcast %53 : vector<8x1xf32> to vector<8x128xf32>
      %63 = arith.mulf %61, %62 : vector<8x128xf32>
      %c0_36 = arith.constant 0 : index
      %c0_37 = arith.constant 0 : index
      %64 = vector.load %arg9[%c0_36, %c0_37] : memref<8x128xf32, #tpu.memory_space<vmem>>, vector<8x128xf32>
      tpu.vector_store %arg9[%c0_36, %c0_37], %63 {strides = array<i32>} : memref<8x128xf32, #tpu.memory_space<vmem>>, vector<8x128xf32>,
      %c0_38 = arith.constant 0 : index
      %c0_39 = arith.constant 0 : index
      %65 = vector.load %arg2[%c0_38, %c0_39] : memref<8x32xf32, #tpu.memory_space<vmem>>, vector<8x32xf32>
      %c0_40 = arith.constant 0 : index
      %c0_41 = arith.constant 0 : index
      %66 = vector.load %arg6[%c0_40, %c0_41] : memref<32x32xf32, #tpu.memory_space<vmem>>, vector<32x32xf32>
      %cst_42 = arith.constant dense<0.000000e+00> : vector<8x32xf32>
      %67 = tpu.matmul %65, %66, %cst_42 {dimension_numbers = #tpu.dot_dimension_numbers<[1], [0], [0], [1], [0, 0, 1, 1], [], []>} : vector<8x32xf32>, vector<32x32xf32>, vector<8x32xf32> -> vector<8x32xf32>
      %c0_43 = arith.constant 0 : index
      %c0_44 = arith.constant 0 : index
      %68 = vector.load %arg7[%c0_43, %c0_44] : memref<32x32xf32, #tpu.memory_space<vmem>>, vector<32x32xf32>
      %cst_45 = arith.constant dense<0.000000e+00> : vector<8x32xf32>
      %69 = tpu.matmul %56, %68, %cst_45 {dimension_numbers = #tpu.dot_dimension_numbers<[1], [0], [0], [1], [0, 0, 1, 1], [], []>} : vector<8x32xf32>, vector<32x32xf32>, vector<8x32xf32> -> vector<8x32xf32>
      %70 = arith.addf %67, %69 : vector<8x32xf32>
      %71 = math.tanh %70 : vector<8x32xf32>
      %c0_46 = arith.constant 0 : index
      %c0_47 = arith.constant 0 : index
      %72 = vector.load %arg8[%c0_46, %c0_47] : memref<8x32xf32, #tpu.memory_space<vmem>>, vector<8x32xf32>
      tpu.vector_store %arg8[%c0_46, %c0_47], %71 {strides = array<i32>} : memref<8x32xf32, #tpu.memory_space<vmem>>, vector<8x32xf32>,
    } else {
    }
    return
  }
  func.func @transform_0(%arg0: i32, %arg1: i32) -> (i32, i32) {
    %c0_i32 = arith.constant 0 : i32
    %c0_i32_0 = arith.constant 0 : i32
    return %arg0, %c0_i32 : i32, i32
  }
  func.func @transform_1(%arg0: i32, %arg1: i32) -> (i32, i32, i32) {
    %c0_i32 = arith.constant 0 : i32
    %c0_i32_0 = arith.constant 0 : i32
    return %arg1, %arg0, %c0_i32 : i32, i32, i32
  }
  func.func @transform_2(%arg0: i32, %arg1: i32) -> (i32, i32) {
    %c0_i32 = arith.constant 0 : i32
    return %arg0, %arg1 : i32, i32
  }
  func.func @transform_3(%arg0: i32, %arg1: i32) -> (i32, i32) {
    %c0_i32 = arith.constant 0 : i32
    %c0_i32_0 = arith.constant 0 : i32
    %c0_i32_1 = arith.constant 0 : i32
    return %c0_i32, %c0_i32_0 : i32, i32
  }
  func.func @transform_4(%arg0: i32, %arg1: i32) -> (i32, i32) {
    %c0_i32 = arith.constant 0 : i32
    %c0_i32_0 = arith.constant 0 : i32
    %c0_i32_1 = arith.constant 0 : i32
    return %c0_i32, %c0_i32_0 : i32, i32
  }
  func.func @transform_5(%arg0: i32, %arg1: i32) -> (i32, i32) {
    %c0_i32 = arith.constant 0 : i32
    %c0_i32_0 = arith.constant 0 : i32
    %c0_i32_1 = arith.constant 0 : i32
    return %c0_i32, %c0_i32_0 : i32, i32
  }
  func.func @transform_6(%arg0: i32, %arg1: i32) -> (i32, i32) {
    %c0_i32 = arith.constant 0 : i32
    %c0_i32_0 = arith.constant 0 : i32
    return %arg0, %c0_i32 : i32, i32
  }
  func.func @transform_7(%arg0: i32, %arg1: i32) -> (i32, i32) {
    %c0_i32 = arith.constant 0 : i32
    %c0_i32_0 = arith.constant 0 : i32
    return %arg0, %c0_i32 : i32, i32
  }
}

</mosaic_0001>

<llo_original>
// kernel: tpu_custom_call.1
$region0: #{tpu_custom_call.1}
  #allocation0 [shape = 'u32[]', space=smem, size = 0x4, offset = 0x4, fixed_abs, tag = 'smem constant byte address 0x4 - core index']
  #allocation1 [shape = 'u32[144,128]{1,0:T(1,128)}', space=vmem, size = 0x12000, scoped, tag = 'internal scratch']
  #allocation2 [shape = 'f32[8,32]{1,0:T(8,128)}', space=vmem, size = 0x1000, scoped, tag = 'scratch operand']
  #allocation3 [shape = 'f32[8,1]{1,0:T(8,128)}', space=vmem, size = 0x1000, scoped, tag = 'scratch operand']
  #allocation4 [shape = 'f32[8,1]{1,0:T(8,128)}', space=vmem, size = 0x1000, scoped, tag = 'scratch operand']
  #allocation5 [shape = 'f32[8,32]{1,0:T(8,128)}', space=vmem, size = 0x1000, scoped, tag = 'scratch operand']
  #allocation6 [shape = 'f32[8,128]{1,0:T(8,128)}', space=vmem, size = 0x1000, scoped, tag = 'scratch operand']
  %s0 = inlined_call_operand.vmem [shape: f32[8,32], index: 0, kind: input, shape index: {}]
  %s1 = inlined_call_operand.vmem [shape: f32[128,8,32], index: 1, kind: input, shape index: {}]
  %s2 = inlined_call_operand.vmem [shape: s32[8,128], index: 2, kind: input, shape index: {}]
  %s3 = inlined_call_operand.vmem [shape: f32[32,32], index: 3, kind: input, shape index: {}]
  %s4 = inlined_call_operand.vmem [shape: f32[32,32], index: 4, kind: input, shape index: {}]
  %s5 = inlined_call_operand.vmem [shape: f32[32,32], index: 5, kind: input, shape index: {}]
  %s6 = inlined_call_operand.hbm [shape: f32[8,32], index: 6, kind: output, shape index: {0}]
  %s7 = inlined_call_operand.hbm [shape: f32[8,128], index: 7, kind: output, shape index: {1}]
  %8 = xla_tuple %s6, %s7
  %s9 = sld [smem:[#allocation0]]
  $region50: #{tpu_custom_call.1} parent=0
    _
  %s11 = ssub.s32 1, %s9
  %s12 = scalar_select 0, %s11, %s9
  $region1: #{tpu_custom_call.1} parent=0
    #allocation7 [shape = 'u8[4096]{0}', space=vmem, size = 0x1000, scoped, tag = 'output window, operand 0, single buffered']
    #allocation8 [shape = 's32[1]{0}', space=sflag, size = 0x4, scoped, tag = 'scoped memory for tpu_custom_call.1']
    #allocation9 [shape = 'u8[4096]{0}', space=vmem, size = 0x1000, scoped, tag = 'output window, operand 1, single buffered']
    #allocation10 [shape = 's32[1]{0}', space=sflag, size = 0x4, scoped, tag = 'scoped memory for tpu_custom_call.1']
    %13 = vsyncpa [#allocation8], 0
    %14 = vsyncpa [#allocation10], 0
    // Predicated region
    $region2: #{tpu_custom_call.1} parent=1 // pred_check
      _
    $region3: #{tpu_custom_call.1} parent=1 // pred_check_branch
      %16 = sbr.rel (0) target = $region5
    $region4: #{tpu_custom_call.1} parent=1 // pred_region
      _
    $region5: #{tpu_custom_call.1} parent=1 // pred_fallthru
      _
    // Predicated region
    $region6: #{tpu_custom_call.1} parent=1 // pred_check
      _
    $region7: #{tpu_custom_call.1} parent=1 // pred_check_branch
      %18 = sbr.rel (0) target = $region9
    $region8: #{tpu_custom_call.1} parent=1 // pred_region
      _
    $region9: #{tpu_custom_call.1} parent=1 // pred_fallthru
      _
    // Predicated region
    $region10: #{tpu_custom_call.1} parent=1 // pred_check
      _
    $region11: #{tpu_custom_call.1} parent=1 // pred_check_branch
      %20 = sbr.rel (0) target = $region13
    $region12: #{tpu_custom_call.1} parent=1 // pred_region
      _
    $region13: #{tpu_custom_call.1} parent=1 // pred_fallthru
      _
    // Predicated region
    $region14: #{tpu_custom_call.1} parent=1 // pred_check
      _
    $region15: #{tpu_custom_call.1} parent=1 // pred_check_branch
      %22 = sbr.rel (0) target = $region17
    $region16: #{tpu_custom_call.1} parent=1 // pred_region
      _
    $region17: #{tpu_custom_call.1} parent=1 // pred_fallthru
      _
    // Predicated region
    $region18: #{tpu_custom_call.1} parent=1 // pred_check
      _
    $region19: #{tpu_custom_call.1} parent=1 // pred_check_branch
      %24 = sbr.rel (0) target = $region21
    $region20: #{tpu_custom_call.1} parent=1 // pred_region
      _
    $region21: #{tpu_custom_call.1} parent=1 // pred_fallthru
      _
    // Predicated region
    $region22: #{tpu_custom_call.1} parent=1 // pred_check
      _
    $region23: #{tpu_custom_call.1} parent=1 // pred_check_branch
      %26 = sbr.rel (0) target = $region25
    $region24: #{tpu_custom_call.1} parent=1 // pred_region
      _
    $region25: #{tpu_custom_call.1} parent=1 // pred_fallthru
      _
    %p27 = scmp.eq.s32.totalorder 0, 0
    // Predicated region
    $region26: #{tpu_custom_call.1} parent=1 // pred_check
      %p28 = pneg %p27
    $region27: #{tpu_custom_call.1} parent=1 // pred_check_branch
      %30 = sbr.rel (%p28) target = $region29
    $region28: #{tpu_custom_call.1} parent=1 // pred_region
      %v31 = vld [vmem:[%s0] sm:$0xff]
      %v32 = vld [vmem:[%s3] sm:$0xff]
      %v33 = vld [vmem:[%s3 + $0x8] sm:$0xff]
      %v34 = vld [vmem:[%s3 + $0x10] sm:$0xff]
      %v35 = vld [vmem:[%s3 + $0x18] sm:$0xff]
      %vm36 = vcmask 261120
      %v38 = vsel %vm36, %v31, 0
      %40 = vmatprep.subr.mxu0 0.0
      %41 = vmatpush1.msra.mxu0 0.0
      %42 = vmatprep.subr.mxu0 0.0
      %43 = vmatpush1.msra.mxu0 0.0
      %44 = vmatprep.subr.mxu0 0.0
      %45 = vmatpush1.msra.mxu0 0.0
      %46 = vmatprep.subr.mxu0 0.0
      %47 = vmatpush1.msra.mxu0 0.0
      %48 = vmatprep.subr.mxu0 0.0
      %49 = vmatpush1.msra.mxu0 0.0
      %50 = vmatprep.subr.mxu0 0.0
      %51 = vmatpush1.msra.mxu0 0.0
      %52 = vmatprep.subr.mxu0 0.0
      %53 = vmatpush1.msra.mxu0 0.0
      %54 = vmatprep.subr.mxu0 0.0
      %55 = vmatpush1.msra.mxu0 0.0
      %56 = vmatprep.subr.mxu0 0.0
      %57 = vmatpush1.msra.mxu0 0.0
      %58 = vmatprep.subr.mxu0 0.0
      %59 = vmatpush1.msra.mxu0 0.0
      %60 = vmatprep.subr.mxu0 0.0
      %61 = vmatpush1.msra.mxu0 0.0
      %62 = vmatprep.subr.mxu0 0.0
      %63 = vmatpush1.msra.mxu0 0.0
      %64 = vmatprep.subr.mxu0 0.0
      %65 = vmatpush1.msra.mxu0 %v35
      %66 = vmatprep.subr.mxu0 0.0
      %67 = vmatpush1.msra.mxu0 %v34
      %68 = vmatprep.subr.mxu0 0.0
      %69 = vmatpush1.msra.mxu0 %v33
      %70 = vmatprep.subr.mxu0 0.0
      %71 = vmatpush1.msra.mxu0 %v32
      %72 = vmatprep.subr.mxu0 0.0
      %73 = vmatpush2.msra.mxu0 0.0
      %74 = vmatprep.subr.mxu0 0.0
      %75 = vmatpush2.msra.mxu0 0.0
      %76 = vmatprep.subr.mxu0 0.0
      %77 = vmatpush2.msra.mxu0 0.0
      %78 = vmatprep.subr.mxu0 0.0
      %79 = vmatpush2.msra.mxu0 0.0
      %80 = vmatprep.subr.mxu0 0.0
      %81 = vmatpush2.msra.mxu0 0.0
      %82 = vmatprep.subr.mxu0 0.0
      %83 = vmatpush2.msra.mxu0 0.0
      %84 = vmatprep.subr.mxu0 0.0
      %85 = vmatpush2.msra.mxu0 0.0
      %86 = vmatprep.subr.mxu0 0.0
      %87 = vmatpush2.msra.mxu0 0.0
      %88 = vmatprep.subr.mxu0 0.0
      %89 = vmatpush2.msra.mxu0 0.0
      %90 = vmatprep.subr.mxu0 0.0
      %91 = vmatpush2.msra.mxu0 0.0
      %92 = vmatprep.subr.mxu0 0.0
      %93 = vmatpush2.msra.mxu0 0.0
      %94 = vmatprep.subr.mxu0 0.0
      %95 = vmatpush2.msra.mxu0 0.0
      %96 = vmatprep.subr.mxu0 0.0
      %97 = vmatpush2.msra.mxu0 0.0
      %98 = vmatprep.subr.mxu0 0.0
      %99 = vmatpush2.msra.mxu0 0.0
      %100 = vmatprep.subr.mxu0 0.0
      %101 = vmatpush2.msra.mxu0 0.0
      %102 = vmatprep.subr.mxu0 0.0
      %103 = vmatpush2.msra.mxu0 0.0
      %104 = vmatprep.mubr.f32.mxu0 0.0
      %105 = vmatmul.mubr.f32.gmra.mxu0 %v38
      %v106 = vpop.f32.mrf.mxu0
      %v107 = vadd.f32 0.0, %v106
      %v108 = vpop.f32.mrf.mxu0
      %109 = vdwg.mxu0
      %110 = vst.msk [vmem:[#allocation2] sm:$0xff] %vm36, %v107
      %vm111 = vcmask 7168
      %112 = vst.msk [vmem:[#allocation3] sm:$0xff] %vm111, -1e+30
      %113 = vst.msk [vmem:[#allocation4] sm:$0xff] %vm111, 0.0
      %114 = vst.msk [vmem:[#allocation5] sm:$0xff] %vm36, 0.0
    $region29: #{tpu_custom_call.1} parent=1 // pred_fallthru
      _
    %v115 = vld [vmem:[%s1] sm:$0xff]
    %v116 = vld [vmem:[%s1 + $0x8] sm:$0xff]
    %v117 = vld [vmem:[%s1 + $0x10] sm:$0xff]
    %v118 = vld [vmem:[%s1 + $0x18] sm:$0xff]
    %v119 = vld [vmem:[%s1 + $0x20] sm:$0xff]
    %v120 = vld [vmem:[%s1 + $0x28] sm:$0xff]
    %v121 = vld [vmem:[%s1 + $0x30] sm:$0xff]
    %v122 = vld [vmem:[%s1 + $0x38] sm:$0xff]
    %v123 = vld [vmem:[%s1 + $0x40] sm:$0xff]
    %v124 = vld [vmem:[%s1 + $0x48] sm:$0xff]
    %v125 = vld [vmem:[%s1 + $0x50] sm:$0xff]
    %v126 = vld [vmem:[%s1 + $0x58] sm:$0xff]
    %v127 = vld [vmem:[%s1 + $0x60] sm:$0xff]
    %v128 = vld [vmem:[%s1 + $0x68] sm:$0xff]
    %v129 = vld [vmem:[%s1 + $0x70] sm:$0xff]
    %v130 = vld [vmem:[%s1 + $0x78] sm:$0xff]
    %v131 = vld [vmem:[%s1 + $0x80] sm:$0xff]
    %v132 = vld [vmem:[%s1 + $0x88] sm:$0xff]
    %v133 = vld [vmem:[%s1 + $0x90] sm:$0xff]
    %v134 = vld [vmem:[%s1 + $0x98] sm:$0xff]
    %v135 = vld [vmem:[%s1 + $0xa0] sm:$0xff]
    %v136 = vld [vmem:[%s1 + $0xa8] sm:$0xff]
    %v137 = vld [vmem:[%s1 + $0xb0] sm:$0xff]
    %v138 = vld [vmem:[%s1 + $0xb8] sm:$0xff]
    %v139 = vld [vmem:[%s1 + $0xc0] sm:$0xff]
    %v140 = vld [vmem:[%s1 + $0xc8] sm:$0xff]
    %v141 = vld [vmem:[%s1 + $0xd0] sm:$0xff]
    %v142 = vld [vmem:[%s1 + $0xd8] sm:$0xff]
    %v143 = vld [vmem:[%s1 + $0xe0] sm:$0xff]
    %v144 = vld [vmem:[%s1 + $0xe8] sm:$0xff]
    %v145 = vld [vmem:[%s1 + $0xf0] sm:$0xff]
    %v146 = vld [vmem:[%s1 + $0xf8] sm:$0xff]
    %v147 = vld [vmem:[%s1 + $0x100] sm:$0xff]
    %v148 = vld [vmem:[%s1 + $0x108] sm:$0xff]
    %v149 = vld [vmem:[%s1 + $0x110] sm:$0xff]
    %v150 = vld [vmem:[%s1 + $0x118] sm:$0xff]
    %v151 = vld [vmem:[%s1 + $0x120] sm:$0xff]
    %v152 = vld [vmem:[%s1 + $0x128] sm:$0xff]
    %v153 = vld [vmem:[%s1 + $0x130] sm:$0xff]
    %v154 = vld [vmem:[%s1 + $0x138] sm:$0xff]
    %v155 = vld [vmem:[%s1 + $0x140] sm:$0xff]
    %v156 = vld [vmem:[%s1 + $0x148] sm:$0xff]
    %v157 = vld [vmem:[%s1 + $0x150] sm:$0xff]
    %v158 = vld [vmem:[%s1 + $0x158] sm:$0xff]
    %v159 = vld [vmem:[%s1 + $0x160] sm:$0xff]
    %v160 = vld [vmem:[%s1 + $0x168] sm:$0xff]
    %v161 = vld [vmem:[%s1 + $0x170] sm:$0xff]
    %v162 = vld [vmem:[%s1 + $0x178] sm:$0xff]
    %v163 = vld [vmem:[%s1 + $0x180] sm:$0xff]
    %v164 = vld [vmem:[%s1 + $0x188] sm:$0xff]
    %v165 = vld [vmem:[%s1 + $0x190] sm:$0xff]
    %v166 = vld [vmem:[%s1 + $0x198] sm:$0xff]
    %v167 = vld [vmem:[%s1 + $0x1a0] sm:$0xff]
    %v168 = vld [vmem:[%s1 + $0x1a8] sm:$0xff]
    %v169 = vld [vmem:[%s1 + $0x1b0] sm:$0xff]
    %v170 = vld [vmem:[%s1 + $0x1b8] sm:$0xff]
    %v171 = vld [vmem:[%s1 + $0x1c0] sm:$0xff]
    %v172 = vld [vmem:[%s1 + $0x1c8] sm:$0xff]
    %v173 = vld [vmem:[%s1 + $0x1d0] sm:$0xff]
    %v174 = vld [vmem:[%s1 + $0x1d8] sm:$0xff]
    %v175 = vld [vmem:[%s1 + $0x1e0] sm:$0xff]
    %v176 = vld [vmem:[%s1 + $0x1e8] sm:$0xff]
    %v177 = vld [vmem:[%s1 + $0x1f0] sm:$0xff]
    %v178 = vld [vmem:[%s1 + $0x1f8] sm:$0xff]
    %v179 = vld [vmem:[%s1 + $0x200] sm:$0xff]
    %v180 = vld [vmem:[%s1 + $0x208] sm:$0xff]
    %v181 = vld [vmem:[%s1 + $0x210] sm:$0xff]
    %v182 = vld [vmem:[%s1 + $0x218] sm:$0xff]
    %v183 = vld [vmem:[%s1 + $0x220] sm:$0xff]
    %v184 = vld [vmem:[%s1 + $0x228] sm:$0xff]
    %v185 = vld [vmem:[%s1 + $0x230] sm:$0xff]
    %v186 = vld [vmem:[%s1 + $0x238] sm:$0xff]
    %v187 = vld [vmem:[%s1 + $0x240] sm:$0xff]
    %v188 = vld [vmem:[%s1 + $0x248] sm:$0xff]
    %v189 = vld [vmem:[%s1 + $0x250] sm:$0xff]
    %v190 = vld [vmem:[%s1 + $0x258] sm:$0xff]
    %v191 = vld [vmem:[%s1 + $0x260] sm:$0xff]
    %v192 = vld [vmem:[%s1 + $0x268] sm:$0xff]
    %v193 = vld [vmem:[%s1 + $0x270] sm:$0xff]
    %v194 = vld [vmem:[%s1 + $0x278] sm:$0xff]
    %v195 = vld [vmem:[%s1 + $0x280] sm:$0xff]
    %v196 = vld [vmem:[%s1 + $0x288] sm:$0xff]
    %v197 = vld [vmem:[%s1 + $0x290] sm:$0xff]
    %v198 = vld [vmem:[%s1 + $0x298] sm:$0xff]
    %v199 = vld [vmem:[%s1 + $0x2a0] sm:$0xff]
    %v200 = vld [vmem:[%s1 + $0x2a8] sm:$0xff]
    %v201 = vld [vmem:[%s1 + $0x2b0] sm:$0xff]
    %v202 = vld [vmem:[%s1 + $0x2b8] sm:$0xff]
    %v203 = vld [vmem:[%s1 + $0x2c0] sm:$0xff]
    %v204 = vld [vmem:[%s1 + $0x2c8] sm:$0xff]
    %v205 = vld [vmem:[%s1 + $0x2d0] sm:$0xff]
    %v206 = vld [vmem:[%s1 + $0x2d8] sm:$0xff]
    %v207 = vld [vmem:[%s1 + $0x2e0] sm:$0xff]
    %v208 = vld [vmem:[%s1 + $0x2e8] sm:$0xff]
    %v209 = vld [vmem:[%s1 + $0x2f0] sm:$0xff]
    %v210 = vld [vmem:[%s1 + $0x2f8] sm:$0xff]
    %v211 = vld [vmem:[%s1 + $0x300] sm:$0xff]
    %v212 = vld [vmem:[%s1 + $0x308] sm:$0xff]
    %v213 = vld [vmem:[%s1 + $0x310] sm:$0xff]
    %v214 = vld [vmem:[%s1 + $0x318] sm:$0xff]
    %v215 = vld [vmem:[%s1 + $0x320] sm:$0xff]
    %v216 = vld [vmem:[%s1 + $0x328] sm:$0xff]
    %v217 = vld [vmem:[%s1 + $0x330] sm:$0xff]
    %v218 = vld [vmem:[%s1 + $0x338] sm:$0xff]
    %v219 = vld [vmem:[%s1 + $0x340] sm:$0xff]
    %v220 = vld [vmem:[%s1 + $0x348] sm:$0xff]
    %v221 = vld [vmem:[%s1 + $0x350] sm:$0xff]
    %v222 = vld [vmem:[%s1 + $0x358] sm:$0xff]
    %v223 = vld [vmem:[%s1 + $0x360] sm:$0xff]
    %v224 = vld [vmem:[%s1 + $0x368] sm:$0xff]
    %v225 = vld [vmem:[%s1 + $0x370] sm:$0xff]
    %v226 = vld [vmem:[%s1 + $0x378] sm:$0xff]
    %v227 = vld [vmem:[%s1 + $0x380] sm:$0xff]
    %v228 = vld [vmem:[%s1 + $0x388] sm:$0xff]
    %v229 = vld [vmem:[%s1 + $0x390] sm:$0xff]
    %v230 = vld [vmem:[%s1 + $0x398] sm:$0xff]
    %v231 = vld [vmem:[%s1 + $0x3a0] sm:$0xff]
    %v232 = vld [vmem:[%s1 + $0x3a8] sm:$0xff]
    %v233 = vld [vmem:[%s1 + $0x3b0] sm:$0xff]
    %v234 = vld [vmem:[%s1 + $0x3b8] sm:$0xff]
    %v235 = vld [vmem:[%s1 + $0x3c0] sm:$0xff]
    %v236 = vld [vmem:[%s1 + $0x3c8] sm:$0xff]
    %v237 = vld [vmem:[%s1 + $0x3d0] sm:$0xff]
    %v238 = vld [vmem:[%s1 + $0x3d8] sm:$0xff]
    %v239 = vld [vmem:[%s1 + $0x3e0] sm:$0xff]
    %v240 = vld [vmem:[%s1 + $0x3e8] sm:$0xff]
    %v241 = vld [vmem:[%s1 + $0x3f0] sm:$0xff]
    %v242 = vld [vmem:[%s1 + $0x3f8] sm:$0xff]
    %v243 = vld [vmem:[#allocation2] sm:$0xff]
    %v244 = vmul.f32 %v115, %v243
    %v245 = vmul.f32 %v116, %v243
    %v246 = vmul.f32 %v117, %v243
    %v247 = vmul.f32 %v118, %v243
    %v248 = vmul.f32 %v119, %v243
    %v249 = vmul.f32 %v120, %v243
    %v250 = vmul.f32 %v121, %v243
    %v251 = vmul.f32 %v122, %v243
    %v252 = vmul.f32 %v123, %v243
    %v253 = vmul.f32 %v124, %v243
    %v254 = vmul.f32 %v125, %v243
    %v255 = vmul.f32 %v126, %v243
    %v256 = vmul.f32 %v127, %v243
    %v257 = vmul.f32 %v128, %v243
    %v258 = vmul.f32 %v129, %v243
    %v259 = vmul.f32 %v130, %v243
    %v260 = vmul.f32 %v131, %v243
    %v261 = vmul.f32 %v132, %v243
    %v262 = vmul.f32 %v133, %v243
    %v263 = vmul.f32 %v134, %v243
    %v264 = vmul.f32 %v135, %v243
    %v265 = vmul.f32 %v136, %v243
    %v266 = vmul.f32 %v137, %v243
    %v267 = vmul.f32 %v138, %v243
    %v268 = vmul.f32 %v139, %v243
    %v269 = vmul.f32 %v140, %v243
    %v270 = vmul.f32 %v141, %v243
    %v271 = vmul.f32 %v142, %v243
    %v272 = vmul.f32 %v143, %v243
    %v273 = vmul.f32 %v144, %v243
    %v274 = vmul.f32 %v145, %v243
    %v275 = vmul.f32 %v146, %v243
    %v276 = vmul.f32 %v147, %v243
    %v277 = vmul.f32 %v148, %v243
    %v278 = vmul.f32 %v149, %v243
    %v279 = vmul.f32 %v150, %v243
    %v280 = vmul.f32 %v151, %v243
    %v281 = vmul.f32 %v152, %v243
    %v282 = vmul.f32 %v153, %v243
    %v283 = vmul.f32 %v154, %v243
    %v284 = vmul.f32 %v155, %v243
    %v285 = vmul.f32 %v156, %v243
    %v286 = vmul.f32 %v157, %v243
    %v287 = vmul.f32 %v158, %v243
    %v288 = vmul.f32 %v159, %v243
    %v289 = vmul.f32 %v160, %v243
    %v290 = vmul.f32 %v161, %v243
    %v291 = vmul.f32 %v162, %v243
    %v292 = vmul.f32 %v163, %v243
    %v293 = vmul.f32 %v164, %v243
    %v294 = vmul.f32 %v165, %v243
    %v295 = vmul.f32 %v166, %v243
    %v296 = vmul.f32 %v167, %v243
    %v297 = vmul.f32 %v168, %v243
    %v298 = vmul.f32 %v169, %v243
    %v299 = vmul.f32 %v170, %v243
    %v300 = vmul.f32 %v171, %v243
    %v301 = vmul.f32 %v172, %v243
    %v302 = vmul.f32 %v173, %v243
    %v303 = vmul.f32 %v174, %v243
    %v304 = vmul.f32 %v175, %v243
    %v305 = vmul.f32 %v176, %v243
    %v306 = vmul.f32 %v177, %v243
    %v307 = vmul.f32 %v178, %v243
    %v308 = vmul.f32 %v179, %v243
    %v309 = vmul.f32 %v180, %v243
    %v310 = vmul.f32 %v181, %v243
    %v311 = vmul.f32 %v182, %v243
    %v312 = vmul.f32 %v183, %v243
    %v313 = vmul.f32 %v184, %v243
    %v314 = vmul.f32 %v185, %v243
    %v315 = vmul.f32 %v186, %v243
    %v316 = vmul.f32 %v187, %v243
    %v317 = vmul.f32 %v188, %v243
    %v318 = vmul.f32 %v189, %v243
    %v319 = vmul.f32 %v190, %v243
    %v320 = vmul.f32 %v191, %v243
    %v321 = vmul.f32 %v192, %v243
    %v322 = vmul.f32 %v193, %v243
    %v323 = vmul.f32 %v194, %v243
    %v324 = vmul.f32 %v195, %v243
    %v325 = vmul.f32 %v196, %v243
    %v326 = vmul.f32 %v197, %v243
    %v327 = vmul.f32 %v198, %v243
    %v328 = vmul.f32 %v199, %v243
    %v329 = vmul.f32 %v200, %v243
    %v330 = vmul.f32 %v201, %v243
    %v331 = vmul.f32 %v202, %v243
    %v332 = vmul.f32 %v203, %v243
    %v333 = vmul.f32 %v204, %v243
    %v334 = vmul.f32 %v205, %v243
    %v335 = vmul.f32 %v206, %v243
    %v336 = vmul.f32 %v207, %v243
    %v337 = vmul.f32 %v208, %v243
    %v338 = vmul.f32 %v209, %v243
    %v339 = vmul.f32 %v210, %v243
    %v340 = vmul.f32 %v211, %v243
    %v341 = vmul.f32 %v212, %v243
    %v342 = vmul.f32 %v213, %v243
    %v343 = vmul.f32 %v214, %v243
    %v344 = vmul.f32 %v215, %v243
    %v345 = vmul.f32 %v216, %v243
    %v346 = vmul.f32 %v217, %v243
    %v347 = vmul.f32 %v218, %v243
    %v348 = vmul.f32 %v219, %v243
    %v349 = vmul.f32 %v220, %v243
    %v350 = vmul.f32 %v221, %v243
    %v351 = vmul.f32 %v222, %v243
    %v352 = vmul.f32 %v223, %v243
    %v353 = vmul.f32 %v224, %v243
    %v354 = vmul.f32 %v225, %v243
    %v355 = vmul.f32 %v226, %v243
    %v356 = vmul.f32 %v227, %v243
    %v357 = vmul.f32 %v228, %v243
    %v358 = vmul.f32 %v229, %v243
    %v359 = vmul.f32 %v230, %v243
    %v360 = vmul.f32 %v231, %v243
    %v361 = vmul.f32 %v232, %v243
    %v362 = vmul.f32 %v233, %v243
    %v363 = vmul.f32 %v234, %v243
    %v364 = vmul.f32 %v235, %v243
    %v365 = vmul.f32 %v236, %v243
    %v366 = vmul.f32 %v237, %v243
    %v367 = vmul.f32 %v238, %v243
    %v368 = vmul.f32 %v239, %v243
    %v369 = vmul.f32 %v240, %v243
    %v370 = vmul.f32 %v241, %v243
    %v371 = vmul.f32 %v242, %v243
    %vm372 = vcmask 261120
    %v373 = vsel %vm372, %v244, 0.0
    %374 = vadd.xlane.f32.xlu0 %v373
    %v375 = vpop.xlane.xlu0 %374
    %v376 = vsel %vm372, %v245, 0.0
    %377 = vadd.xlane.f32.xlu0 %v376
    %v378 = vpop.xlane.xlu0 %377
    %v379 = vsel %vm372, %v246, 0.0
    %380 = vadd.xlane.f32.xlu0 %v379
    %v381 = vpop.xlane.xlu0 %380
    %v382 = vsel %vm372, %v247, 0.0
    %383 = vadd.xlane.f32.xlu0 %v382
    %v384 = vpop.xlane.xlu0 %383
    %v385 = vsel %vm372, %v248, 0.0
    %386 = vadd.xlane.f32.xlu0 %v385
    %v387 = vpop.xlane.xlu0 %386
    %v388 = vsel %vm372, %v249, 0.0
    %389 = vadd.xlane.f32.xlu0 %v388
    %v390 = vpop.xlane.xlu0 %389
    %v391 = vsel %vm372, %v250, 0.0
    %392 = vadd.xlane.f32.xlu0 %v391
    %v393 = vpop.xlane.xlu0 %392
    %v394 = vsel %vm372, %v251, 0.0
    %395 = vadd.xlane.f32.xlu0 %v394
    %v396 = vpop.xlane.xlu0 %395
    %v397 = vsel %vm372, %v252, 0.0
    %398 = vadd.xlane.f32.xlu0 %v397
    %v399 = vpop.xlane.xlu0 %398
    %v400 = vsel %vm372, %v253, 0.0
    %401 = vadd.xlane.f32.xlu0 %v400
    %v402 = vpop.xlane.xlu0 %401
    %v403 = vsel %vm372, %v254, 0.0
    %404 = vadd.xlane.f32.xlu0 %v403
    %v405 = vpop.xlane.xlu0 %404
    %v406 = vsel %vm372, %v255, 0.0
    %407 = vadd.xlane.f32.xlu0 %v406
    %v408 = vpop.xlane.xlu0 %407
    %v409 = vsel %vm372, %v256, 0.0
    %410 = vadd.xlane.f32.xlu0 %v409
    %v411 = vpop.xlane.xlu0 %410
    %v412 = vsel %vm372, %v257, 0.0
    %413 = vadd.xlane.f32.xlu0 %v412
    %v414 = vpop.xlane.xlu0 %413
    %v415 = vsel %vm372, %v258, 0.0
    %416 = vadd.xlane.f32.xlu0 %v415
    %v417 = vpop.xlane.xlu0 %416
    %v418 = vsel %vm372, %v259, 0.0
    %419 = vadd.xlane.f32.xlu0 %v418
    %v420 = vpop.xlane.xlu0 %419
    %v421 = vsel %vm372, %v260, 0.0
    %422 = vadd.xlane.f32.xlu0 %v421
    %v423 = vpop.xlane.xlu0 %422
    %v424 = vsel %vm372, %v261, 0.0
    %425 = vadd.xlane.f32.xlu0 %v424
    %v426 = vpop.xlane.xlu0 %425
    %v427 = vsel %vm372, %v262, 0.0
    %428 = vadd.xlane.f32.xlu0 %v427
    %v429 = vpop.xlane.xlu0 %428
    %v430 = vsel %vm372, %v263, 0.0
    %431 = vadd.xlane.f32.xlu0 %v430
    %v432 = vpop.xlane.xlu0 %431
    %v433 = vsel %vm372, %v264, 0.0
    %434 = vadd.xlane.f32.xlu0 %v433
    %v435 = vpop.xlane.xlu0 %434
    %v436 = vsel %vm372, %v265, 0.0
    %437 = vadd.xlane.f32.xlu0 %v436
    %v438 = vpop.xlane.xlu0 %437
    %v439 = vsel %vm372, %v266, 0.0
    %440 = vadd.xlane.f32.xlu0 %v439
    %v441 = vpop.xlane.xlu0 %440
    %v442 = vsel %vm372, %v267, 0.0
    %443 = vadd.xlane.f32.xlu0 %v442
    %v444 = vpop.xlane.xlu0 %443
    %v445 = vsel %vm372, %v268, 0.0
    %446 = vadd.xlane.f32.xlu0 %v445
    %v447 = vpop.xlane.xlu0 %446
    %v448 = vsel %vm372, %v269, 0.0
    %449 = vadd.xlane.f32.xlu0 %v448
    %v450 = vpop.xlane.xlu0 %449
    %v451 = vsel %vm372, %v270, 0.0
    %452 = vadd.xlane.f32.xlu0 %v451
    %v453 = vpop.xlane.xlu0 %452
    %v454 = vsel %vm372, %v271, 0.0
    %455 = vadd.xlane.f32.xlu0 %v454
    %v456 = vpop.xlane.xlu0 %455
    %v457 = vsel %vm372, %v272, 0.0
    %458 = vadd.xlane.f32.xlu0 %v457
    %v459 = vpop.xlane.xlu0 %458
    %v460 = vsel %vm372, %v273, 0.0
    %461 = vadd.xlane.f32.xlu0 %v460
    %v462 = vpop.xlane.xlu0 %461
    %v463 = vsel %vm372, %v274, 0.0
    %464 = vadd.xlane.f32.xlu0 %v463
    %v465 = vpop.xlane.xlu0 %464
    %v466 = vsel %vm372, %v275, 0.0
    %467 = vadd.xlane.f32.xlu0 %v466
    %v468 = vpop.xlane.xlu0 %467
    %v469 = vsel %vm372, %v276, 0.0
    %470 = vadd.xlane.f32.xlu0 %v469
    %v471 = vpop.xlane.xlu0 %470
    %v472 = vsel %vm372, %v277, 0.0
    %473 = vadd.xlane.f32.xlu0 %v472
    %v474 = vpop.xlane.xlu0 %473
    %v475 = vsel %vm372, %v278, 0.0
    %476 = vadd.xlane.f32.xlu0 %v475
    %v477 = vpop.xlane.xlu0 %476
    %v478 = vsel %vm372, %v279, 0.0
    %479 = vadd.xlane.f32.xlu0 %v478
    %v480 = vpop.xlane.xlu0 %479
    %v481 = vsel %vm372, %v280, 0.0
    %482 = vadd.xlane.f32.xlu0 %v481
    %v483 = vpop.xlane.xlu0 %482
    %v484 = vsel %vm372, %v281, 0.0
    %485 = vadd.xlane.f32.xlu0 %v484
    %v486 = vpop.xlane.xlu0 %485
    %v487 = vsel %vm372, %v282, 0.0
    %488 = vadd.xlane.f32.xlu0 %v487
    %v489 = vpop.xlane.xlu0 %488
    %v490 = vsel %vm372, %v283, 0.0
    %491 = vadd.xlane.f32.xlu0 %v490
    %v492 = vpop.xlane.xlu0 %491
    %v493 = vsel %vm372, %v284, 0.0
    %494 = vadd.xlane.f32.xlu0 %v493
    %v495 = vpop.xlane.xlu0 %494
    %v496 = vsel %vm372, %v285, 0.0
    %497 = vadd.xlane.f32.xlu0 %v496
    %v498 = vpop.xlane.xlu0 %497
    %v499 = vsel %vm372, %v286, 0.0
    %500 = vadd.xlane.f32.xlu0 %v499
    %v501 = vpop.xlane.xlu0 %500
    %v502 = vsel %vm372, %v287, 0.0
    %503 = vadd.xlane.f32.xlu0 %v502
    %v504 = vpop.xlane.xlu0 %503
    %v505 = vsel %vm372, %v288, 0.0
    %506 = vadd.xlane.f32.xlu0 %v505
    %v507 = vpop.xlane.xlu0 %506
    %v508 = vsel %vm372, %v289, 0.0
    %509 = vadd.xlane.f32.xlu0 %v508
    %v510 = vpop.xlane.xlu0 %509
    %v511 = vsel %vm372, %v290, 0.0
    %512 = vadd.xlane.f32.xlu0 %v511
    %v513 = vpop.xlane.xlu0 %512
    %v514 = vsel %vm372, %v291, 0.0
    %515 = vadd.xlane.f32.xlu0 %v514
    %v516 = vpop.xlane.xlu0 %515
    %v517 = vsel %vm372, %v292, 0.0
    %518 = vadd.xlane.f32.xlu0 %v517
    %v519 = vpop.xlane.xlu0 %518
    %v520 = vsel %vm372, %v293, 0.0
    %521 = vadd.xlane.f32.xlu0 %v520
    %v522 = vpop.xlane.xlu0 %521
    %v523 = vsel %vm372, %v294, 0.0
    %524 = vadd.xlane.f32.xlu0 %v523
    %v525 = vpop.xlane.xlu0 %524
    %v526 = vsel %vm372, %v295, 0.0
    %527 = vadd.xlane.f32.xlu0 %v526
    %v528 = vpop.xlane.xlu0 %527
    %v529 = vsel %vm372, %v296, 0.0
    %530 = vadd.xlane.f32.xlu0 %v529
    %v531 = vpop.xlane.xlu0 %530
    %v532 = vsel %vm372, %v297, 0.0
    %533 = vadd.xlane.f32.xlu0 %v532
    %v534 = vpop.xlane.xlu0 %533
    %v535 = vsel %vm372, %v298, 0.0
    %536 = vadd.xlane.f32.xlu0 %v535
    %v537 = vpop.xlane.xlu0 %536
    %v538 = vsel %vm372, %v299, 0.0
    %539 = vadd.xlane.f32.xlu0 %v538
    %v540 = vpop.xlane.xlu0 %539
    %v541 = vsel %vm372, %v300, 0.0
    %542 = vadd.xlane.f32.xlu0 %v541
    %v543 = vpop.xlane.xlu0 %542
    %v544 = vsel %vm372, %v301, 0.0
    %545 = vadd.xlane.f32.xlu0 %v544
    %v546 = vpop.xlane.xlu0 %545
    %v547 = vsel %vm372, %v302, 0.0
    %548 = vadd.xlane.f32.xlu0 %v547
    %v549 = vpop.xlane.xlu0 %548
    %v550 = vsel %vm372, %v303, 0.0
    %551 = vadd.xlane.f32.xlu0 %v550
    %v552 = vpop.xlane.xlu0 %551
    %v553 = vsel %vm372, %v304, 0.0
    %554 = vadd.xlane.f32.xlu0 %v553
    %v555 = vpop.xlane.xlu0 %554
    %v556 = vsel %vm372, %v305, 0.0
    %557 = vadd.xlane.f32.xlu0 %v556
    %v558 = vpop.xlane.xlu0 %557
    %v559 = vsel %vm372, %v306, 0.0
    %560 = vadd.xlane.f32.xlu0 %v559
    %v561 = vpop.xlane.xlu0 %560
    %v562 = vsel %vm372, %v307, 0.0
    %563 = vadd.xlane.f32.xlu0 %v562
    %v564 = vpop.xlane.xlu0 %563
    %v565 = vsel %vm372, %v308, 0.0
    %566 = vadd.xlane.f32.xlu0 %v565
    %v567 = vpop.xlane.xlu0 %566
    %v568 = vsel %vm372, %v309, 0.0
    %569 = vadd.xlane.f32.xlu0 %v568
    %v570 = vpop.xlane.xlu0 %569
    %v571 = vsel %vm372, %v310, 0.0
    %572 = vadd.xlane.f32.xlu0 %v571
    %v573 = vpop.xlane.xlu0 %572
    %v574 = vsel %vm372, %v311, 0.0
    %575 = vadd.xlane.f32.xlu0 %v574
    %v576 = vpop.xlane.xlu0 %575
    %v577 = vsel %vm372, %v312, 0.0
    %578 = vadd.xlane.f32.xlu0 %v577
    %v579 = vpop.xlane.xlu0 %578
    %v580 = vsel %vm372, %v313, 0.0
    %581 = vadd.xlane.f32.xlu0 %v580
    %v582 = vpop.xlane.xlu0 %581
    %v583 = vsel %vm372, %v314, 0.0
    %584 = vadd.xlane.f32.xlu0 %v583
    %v585 = vpop.xlane.xlu0 %584
    %v586 = vsel %vm372, %v315, 0.0
    %587 = vadd.xlane.f32.xlu0 %v586
    %v588 = vpop.xlane.xlu0 %587
    %v589 = vsel %vm372, %v316, 0.0
    %590 = vadd.xlane.f32.xlu0 %v589
    %v591 = vpop.xlane.xlu0 %590
    %v592 = vsel %vm372, %v317, 0.0
    %593 = vadd.xlane.f32.xlu0 %v592
    %v594 = vpop.xlane.xlu0 %593
    %v595 = vsel %vm372, %v318, 0.0
    %596 = vadd.xlane.f32.xlu0 %v595
    %v597 = vpop.xlane.xlu0 %596
    %v598 = vsel %vm372, %v319, 0.0
    %599 = vadd.xlane.f32.xlu0 %v598
    %v600 = vpop.xlane.xlu0 %599
    %v601 = vsel %vm372, %v320, 0.0
    %602 = vadd.xlane.f32.xlu0 %v601
    %v603 = vpop.xlane.xlu0 %602
    %v604 = vsel %vm372, %v321, 0.0
    %605 = vadd.xlane.f32.xlu0 %v604
    %v606 = vpop.xlane.xlu0 %605
    %v607 = vsel %vm372, %v322, 0.0
    %608 = vadd.xlane.f32.xlu0 %v607
    %v609 = vpop.xlane.xlu0 %608
    %v610 = vsel %vm372, %v323, 0.0
    %611 = vadd.xlane.f32.xlu0 %v610
    %v612 = vpop.xlane.xlu0 %611
    %v613 = vsel %vm372, %v324, 0.0
    %614 = vadd.xlane.f32.xlu0 %v613
    %v615 = vpop.xlane.xlu0 %614
    %v616 = vsel %vm372, %v325, 0.0
    %617 = vadd.xlane.f32.xlu0 %v616
    %v618 = vpop.xlane.xlu0 %617
    %v619 = vsel %vm372, %v326, 0.0
    %620 = vadd.xlane.f32.xlu0 %v619
    %v621 = vpop.xlane.xlu0 %620
    %v622 = vsel %vm372, %v327, 0.0
    %623 = vadd.xlane.f32.xlu0 %v622
    %v624 = vpop.xlane.xlu0 %623
    %v625 = vsel %vm372, %v328, 0.0
    %626 = vadd.xlane.f32.xlu0 %v625
    %v627 = vpop.xlane.xlu0 %626
    %v628 = vsel %vm372, %v329, 0.0
    %629 = vadd.xlane.f32.xlu0 %v628
    %v630 = vpop.xlane.xlu0 %629
    %v631 = vsel %vm372, %v330, 0.0
    %632 = vadd.xlane.f32.xlu0 %v631
    %v633 = vpop.xlane.xlu0 %632
    %v634 = vsel %vm372, %v331, 0.0
    %635 = vadd.xlane.f32.xlu0 %v634
    %v636 = vpop.xlane.xlu0 %635
    %v637 = vsel %vm372, %v332, 0.0
    %638 = vadd.xlane.f32.xlu0 %v637
    %v639 = vpop.xlane.xlu0 %638
    %v640 = vsel %vm372, %v333, 0.0
    %641 = vadd.xlane.f32.xlu0 %v640
    %v642 = vpop.xlane.xlu0 %641
    %v643 = vsel %vm372, %v334, 0.0
    %644 = vadd.xlane.f32.xlu0 %v643
    %v645 = vpop.xlane.xlu0 %644
    %v646 = vsel %vm372, %v335, 0.0
    %647 = vadd.xlane.f32.xlu0 %v646
    %v648 = vpop.xlane.xlu0 %647
    %v649 = vsel %vm372, %v336, 0.0
    %650 = vadd.xlane.f32.xlu0 %v649
    %v651 = vpop.xlane.xlu0 %650
    %v652 = vsel %vm372, %v337, 0.0
    %653 = vadd.xlane.f32.xlu0 %v652
    %v654 = vpop.xlane.xlu0 %653
    %v655 = vsel %vm372, %v338, 0.0
    %656 = vadd.xlane.f32.xlu0 %v655
    %v657 = vpop.xlane.xlu0 %656
    %v658 = vsel %vm372, %v339, 0.0
    %659 = vadd.xlane.f32.xlu0 %v658
    %v660 = vpop.xlane.xlu0 %659
    %v661 = vsel %vm372, %v340, 0.0
    %662 = vadd.xlane.f32.xlu0 %v661
    %v663 = vpop.xlane.xlu0 %662
    %v664 = vsel %vm372, %v341, 0.0
    %665 = vadd.xlane.f32.xlu0 %v664
    %v666 = vpop.xlane.xlu0 %665
    %v667 = vsel %vm372, %v342, 0.0
    %668 = vadd.xlane.f32.xlu0 %v667
    %v669 = vpop.xlane.xlu0 %668
    %v670 = vsel %vm372, %v343, 0.0
    %671 = vadd.xlane.f32.xlu0 %v670
    %v672 = vpop.xlane.xlu0 %671
    %v673 = vsel %vm372, %v344, 0.0
    %674 = vadd.xlane.f32.xlu0 %v673
    %v675 = vpop.xlane.xlu0 %674
    %v676 = vsel %vm372, %v345, 0.0
    %677 = vadd.xlane.f32.xlu0 %v676
    %v678 = vpop.xlane.xlu0 %677
    %v679 = vsel %vm372, %v346, 0.0
    %680 = vadd.xlane.f32.xlu0 %v679
    %v681 = vpop.xlane.xlu0 %680
    %v682 = vsel %vm372, %v347, 0.0
    %683 = vadd.xlane.f32.xlu0 %v682
    %v684 = vpop.xlane.xlu0 %683
    %v685 = vsel %vm372, %v348, 0.0
    %686 = vadd.xlane.f32.xlu0 %v685
    %v687 = vpop.xlane.xlu0 %686
    %v688 = vsel %vm372, %v349, 0.0
    %689 = vadd.xlane.f32.xlu0 %v688
    %v690 = vpop.xlane.xlu0 %689
    %v691 = vsel %vm372, %v350, 0.0
    %692 = vadd.xlane.f32.xlu0 %v691
    %v693 = vpop.xlane.xlu0 %692
    %v694 = vsel %vm372, %v351, 0.0
    %695 = vadd.xlane.f32.xlu0 %v694
    %v696 = vpop.xlane.xlu0 %695
    %v697 = vsel %vm372, %v352, 0.0
    %698 = vadd.xlane.f32.xlu0 %v697
    %v699 = vpop.xlane.xlu0 %698
    %v700 = vsel %vm372, %v353, 0.0
    %701 = vadd.xlane.f32.xlu0 %v700
    %v702 = vpop.xlane.xlu0 %701
    %v703 = vsel %vm372, %v354, 0.0
    %704 = vadd.xlane.f32.xlu0 %v703
    %v705 = vpop.xlane.xlu0 %704
    %v706 = vsel %vm372, %v355, 0.0
    %707 = vadd.xlane.f32.xlu0 %v706
    %v708 = vpop.xlane.xlu0 %707
    %v709 = vsel %vm372, %v356, 0.0
    %710 = vadd.xlane.f32.xlu0 %v709
    %v711 = vpop.xlane.xlu0 %710
    %v712 = vsel %vm372, %v357, 0.0
    %713 = vadd.xlane.f32.xlu0 %v712
    %v714 = vpop.xlane.xlu0 %713
    %v715 = vsel %vm372, %v358, 0.0
    %716 = vadd.xlane.f32.xlu0 %v715
    %v717 = vpop.xlane.xlu0 %716
    %v718 = vsel %vm372, %v359, 0.0
    %719 = vadd.xlane.f32.xlu0 %v718
    %v720 = vpop.xlane.xlu0 %719
    %v721 = vsel %vm372, %v360, 0.0
    %722 = vadd.xlane.f32.xlu0 %v721
    %v723 = vpop.xlane.xlu0 %722
    %v724 = vsel %vm372, %v361, 0.0
    %725 = vadd.xlane.f32.xlu0 %v724
    %v726 = vpop.xlane.xlu0 %725
    %v727 = vsel %vm372, %v362, 0.0
    %728 = vadd.xlane.f32.xlu0 %v727
    %v729 = vpop.xlane.xlu0 %728
    %v730 = vsel %vm372, %v363, 0.0
    %731 = vadd.xlane.f32.xlu0 %v730
    %v732 = vpop.xlane.xlu0 %731
    %v733 = vsel %vm372, %v364, 0.0
    %734 = vadd.xlane.f32.xlu0 %v733
    %v735 = vpop.xlane.xlu0 %734
    %v736 = vsel %vm372, %v365, 0.0
    %737 = vadd.xlane.f32.xlu0 %v736
    %v738 = vpop.xlane.xlu0 %737
    %v739 = vsel %vm372, %v366, 0.0
    %740 = vadd.xlane.f32.xlu0 %v739
    %v741 = vpop.xlane.xlu0 %740
    %v742 = vsel %vm372, %v367, 0.0
    %743 = vadd.xlane.f32.xlu0 %v742
    %v744 = vpop.xlane.xlu0 %743
    %v745 = vsel %vm372, %v368, 0.0
    %746 = vadd.xlane.f32.xlu0 %v745
    %v747 = vpop.xlane.xlu0 %746
    %v748 = vsel %vm372, %v369, 0.0
    %749 = vadd.xlane.f32.xlu0 %v748
    %v750 = vpop.xlane.xlu0 %749
    %v751 = vsel %vm372, %v370, 0.0
    %752 = vadd.xlane.f32.xlu0 %v751
    %v753 = vpop.xlane.xlu0 %752
    %v754 = vsel %vm372, %v371, 0.0
    %755 = vadd.xlane.f32.xlu0 %v754
    %v756 = vpop.xlane.xlu0 %755
    %v885 = vlaneseq
    %v886 = vand.u32 %v885, 127
    %v887 = vlaneseq
    %v888 = vshrl.u32 %v887, 7
    %v889 = vsub.s32 %v886, %v888
    %v890 = vrot.slane %v375, %v889
    %v891 = vlaneseq
    %v892 = vshrl.u32 %v891, 7
    %v893 = vsub.s32 %v886, %v892
    %v894 = vrot.slane %v378, %v893
    %v895 = vlaneseq
    %v896 = vshrl.u32 %v895, 7
    %v897 = vsub.s32 %v886, %v896
    %v898 = vrot.slane %v381, %v897
    %v899 = vlaneseq
    %v900 = vshrl.u32 %v899, 7
    %v901 = vsub.s32 %v886, %v900
    %v902 = vrot.slane %v384, %v901
    %v903 = vlaneseq
    %v904 = vshrl.u32 %v903, 7
    %v905 = vsub.s32 %v886, %v904
    %v906 = vrot.slane %v387, %v905
    %v907 = vlaneseq
    %v908 = vshrl.u32 %v907, 7
    %v909 = vsub.s32 %v886, %v908
    %v910 = vrot.slane %v390, %v909
    %v911 = vlaneseq
    %v912 = vshrl.u32 %v911, 7
    %v913 = vsub.s32 %v886, %v912
    %v914 = vrot.slane %v393, %v913
    %v915 = vlaneseq
    %v916 = vshrl.u32 %v915, 7
    %v917 = vsub.s32 %v886, %v916
    %v918 = vrot.slane %v396, %v917
    %v919 = vlaneseq
    %v920 = vshrl.u32 %v919, 7
    %v921 = vsub.s32 %v886, %v920
    %v922 = vrot.slane %v399, %v921
    %v923 = vlaneseq
    %v924 = vshrl.u32 %v923, 7
    %v925 = vsub.s32 %v886, %v924
    %v926 = vrot.slane %v402, %v925
    %v927 = vlaneseq
    %v928 = vshrl.u32 %v927, 7
    %v929 = vsub.s32 %v886, %v928
    %v930 = vrot.slane %v405, %v929
    %v931 = vlaneseq
    %v932 = vshrl.u32 %v931, 7
    %v933 = vsub.s32 %v886, %v932
    %v934 = vrot.slane %v408, %v933
    %v935 = vlaneseq
    %v936 = vshrl.u32 %v935, 7
    %v937 = vsub.s32 %v886, %v936
    %v938 = vrot.slane %v411, %v937
    %v939 = vlaneseq
    %v940 = vshrl.u32 %v939, 7
    %v941 = vsub.s32 %v886, %v940
    %v942 = vrot.slane %v414, %v941
    %v943 = vlaneseq
    %v944 = vshrl.u32 %v943, 7
    %v945 = vsub.s32 %v886, %v944
    %v946 = vrot.slane %v417, %v945
    %v947 = vlaneseq
    %v948 = vshrl.u32 %v947, 7
    %v949 = vsub.s32 %v886, %v948
    %v950 = vrot.slane %v420, %v949
    %v951 = vlaneseq
    %v952 = vshrl.u32 %v951, 7
    %v953 = vsub.s32 %v886, %v952
    %v954 = vrot.slane %v423, %v953
    %v955 = vlaneseq
    %v956 = vshrl.u32 %v955, 7
    %v957 = vsub.s32 %v886, %v956
    %v958 = vrot.slane %v426, %v957
    %v959 = vlaneseq
    %v960 = vshrl.u32 %v959, 7
    %v961 = vsub.s32 %v886, %v960
    %v962 = vrot.slane %v429, %v961
    %v963 = vlaneseq
    %v964 = vshrl.u32 %v963, 7
    %v965 = vsub.s32 %v886, %v964
    %v966 = vrot.slane %v432, %v965
    %v967 = vlaneseq
    %v968 = vshrl.u32 %v967, 7
    %v969 = vsub.s32 %v886, %v968
    %v970 = vrot.slane %v435, %v969
    %v971 = vlaneseq
    %v972 = vshrl.u32 %v971, 7
    %v973 = vsub.s32 %v886, %v972
    %v974 = vrot.slane %v438, %v973
    %v975 = vlaneseq
    %v976 = vshrl.u32 %v975, 7
    %v977 = vsub.s32 %v886, %v976
    %v978 = vrot.slane %v441, %v977
    %v979 = vlaneseq
    %v980 = vshrl.u32 %v979, 7
    %v981 = vsub.s32 %v886, %v980
    %v982 = vrot.slane %v444, %v981
    %v983 = vlaneseq
    %v984 = vshrl.u32 %v983, 7
    %v985 = vsub.s32 %v886, %v984
    %v986 = vrot.slane %v447, %v985
    %v987 = vlaneseq
    %v988 = vshrl.u32 %v987, 7
    %v989 = vsub.s32 %v886, %v988
    %v990 = vrot.slane %v450, %v989
    %v991 = vlaneseq
    %v992 = vshrl.u32 %v991, 7
    %v993 = vsub.s32 %v886, %v992
    %v994 = vrot.slane %v453, %v993
    %v995 = vlaneseq
    %v996 = vshrl.u32 %v995, 7
    %v997 = vsub.s32 %v886, %v996
    %v998 = vrot.slane %v456, %v997
    %v999 = vlaneseq
    %v1000 = vshrl.u32 %v999, 7
    %v1001 = vsub.s32 %v886, %v1000
    %v1002 = vrot.slane %v459, %v1001
    %v1003 = vlaneseq
    %v1004 = vshrl.u32 %v1003, 7
    %v1005 = vsub.s32 %v886, %v1004
    %v1006 = vrot.slane %v462, %v1005
    %v1007 = vlaneseq
    %v1008 = vshrl.u32 %v1007, 7
    %v1009 = vsub.s32 %v886, %v1008
    %v1010 = vrot.slane %v465, %v1009
    %v1011 = vlaneseq
    %v1012 = vshrl.u32 %v1011, 7
    %v1013 = vsub.s32 %v886, %v1012
    %v1014 = vrot.slane %v468, %v1013
    %v1015 = vlaneseq
    %v1016 = vshrl.u32 %v1015, 7
    %v1017 = vsub.s32 %v886, %v1016
    %v1018 = vrot.slane %v471, %v1017
    %v1019 = vlaneseq
    %v1020 = vshrl.u32 %v1019, 7
    %v1021 = vsub.s32 %v886, %v1020
    %v1022 = vrot.slane %v474, %v1021
    %v1023 = vlaneseq
    %v1024 = vshrl.u32 %v1023, 7
    %v1025 = vsub.s32 %v886, %v1024
    %v1026 = vrot.slane %v477, %v1025
    %v1027 = vlaneseq
    %v1028 = vshrl.u32 %v1027, 7
    %v1029 = vsub.s32 %v886, %v1028
    %v1030 = vrot.slane %v480, %v1029
    %v1031 = vlaneseq
    %v1032 = vshrl.u32 %v1031, 7
    %v1033 = vsub.s32 %v886, %v1032
    %v1034 = vrot.slane %v483, %v1033
    %v1035 = vlaneseq
    %v1036 = vshrl.u32 %v1035, 7
    %v1037 = vsub.s32 %v886, %v1036
    %v1038 = vrot.slane %v486, %v1037
    %v1039 = vlaneseq
    %v1040 = vshrl.u32 %v1039, 7
    %v1041 = vsub.s32 %v886, %v1040
    %v1042 = vrot.slane %v489, %v1041
    %v1043 = vlaneseq
    %v1044 = vshrl.u32 %v1043, 7
    %v1045 = vsub.s32 %v886, %v1044
    %v1046 = vrot.slane %v492, %v1045
    %v1047 = vlaneseq
    %v1048 = vshrl.u32 %v1047, 7
    %v1049 = vsub.s32 %v886, %v1048
    %v1050 = vrot.slane %v495, %v1049
    %v1051 = vlaneseq
    %v1052 = vshrl.u32 %v1051, 7
    %v1053 = vsub.s32 %v886, %v1052
    %v1054 = vrot.slane %v498, %v1053
    %v1055 = vlaneseq
    %v1056 = vshrl.u32 %v1055, 7
    %v1057 = vsub.s32 %v886, %v1056
    %v1058 = vrot.slane %v501, %v1057
    %v1059 = vlaneseq
    %v1060 = vshrl.u32 %v1059, 7
    %v1061 = vsub.s32 %v886, %v1060
    %v1062 = vrot.slane %v504, %v1061
    %v1063 = vlaneseq
    %v1064 = vshrl.u32 %v1063, 7
    %v1065 = vsub.s32 %v886, %v1064
    %v1066 = vrot.slane %v507, %v1065
    %v1067 = vlaneseq
    %v1068 = vshrl.u32 %v1067, 7
    %v1069 = vsub.s32 %v886, %v1068
    %v1070 = vrot.slane %v510, %v1069
    %v1071 = vlaneseq
    %v1072 = vshrl.u32 %v1071, 7
    %v1073 = vsub.s32 %v886, %v1072
    %v1074 = vrot.slane %v513, %v1073
    %v1075 = vlaneseq
    %v1076 = vshrl.u32 %v1075, 7
    %v1077 = vsub.s32 %v886, %v1076
    %v1078 = vrot.slane %v516, %v1077
    %v1079 = vlaneseq
    %v1080 = vshrl.u32 %v1079, 7
    %v1081 = vsub.s32 %v886, %v1080
    %v1082 = vrot.slane %v519, %v1081
    %v1083 = vlaneseq
    %v1084 = vshrl.u32 %v1083, 7
    %v1085 = vsub.s32 %v886, %v1084
    %v1086 = vrot.slane %v522, %v1085
    %v1087 = vlaneseq
    %v1088 = vshrl.u32 %v1087, 7
    %v1089 = vsub.s32 %v886, %v1088
    %v1090 = vrot.slane %v525, %v1089
    %v1091 = vlaneseq
    %v1092 = vshrl.u32 %v1091, 7
    %v1093 = vsub.s32 %v886, %v1092
    %v1094 = vrot.slane %v528, %v1093
    %v1095 = vlaneseq
    %v1096 = vshrl.u32 %v1095, 7
    %v1097 = vsub.s32 %v886, %v1096
    %v1098 = vrot.slane %v531, %v1097
    %v1099 = vlaneseq
    %v1100 = vshrl.u32 %v1099, 7
    %v1101 = vsub.s32 %v886, %v1100
    %v1102 = vrot.slane %v534, %v1101
    %v1103 = vlaneseq
    %v1104 = vshrl.u32 %v1103, 7
    %v1105 = vsub.s32 %v886, %v1104
    %v1106 = vrot.slane %v537, %v1105
    %v1107 = vlaneseq
    %v1108 = vshrl.u32 %v1107, 7
    %v1109 = vsub.s32 %v886, %v1108
    %v1110 = vrot.slane %v540, %v1109
    %v1111 = vlaneseq
    %v1112 = vshrl.u32 %v1111, 7
    %v1113 = vsub.s32 %v886, %v1112
    %v1114 = vrot.slane %v543, %v1113
    %v1115 = vlaneseq
    %v1116 = vshrl.u32 %v1115, 7
    %v1117 = vsub.s32 %v886, %v1116
    %v1118 = vrot.slane %v546, %v1117
    %v1119 = vlaneseq
    %v1120 = vshrl.u32 %v1119, 7
    %v1121 = vsub.s32 %v886, %v1120
    %v1122 = vrot.slane %v549, %v1121
    %v1123 = vlaneseq
    %v1124 = vshrl.u32 %v1123, 7
    %v1125 = vsub.s32 %v886, %v1124
    %v1126 = vrot.slane %v552, %v1125
    %v1127 = vlaneseq
    %v1128 = vshrl.u32 %v1127, 7
    %v1129 = vsub.s32 %v886, %v1128
    %v1130 = vrot.slane %v555, %v1129
    %v1131 = vlaneseq
    %v1132 = vshrl.u32 %v1131, 7
    %v1133 = vsub.s32 %v886, %v1132
    %v1134 = vrot.slane %v558, %v1133
    %v1135 = vlaneseq
    %v1136 = vshrl.u32 %v1135, 7
    %v1137 = vsub.s32 %v886, %v1136
    %v1138 = vrot.slane %v561, %v1137
    %v1139 = vlaneseq
    %v1140 = vshrl.u32 %v1139, 7
    %v1141 = vsub.s32 %v886, %v1140
    %v1142 = vrot.slane %v564, %v1141
    %v1143 = vlaneseq
    %v1144 = vshrl.u32 %v1143, 7
    %v1145 = vsub.s32 %v886, %v1144
    %v1146 = vrot.slane %v567, %v1145
    %v1147 = vlaneseq
    %v1148 = vshrl.u32 %v1147, 7
    %v1149 = vsub.s32 %v886, %v1148
    %v1150 = vrot.slane %v570, %v1149
    %v1151 = vlaneseq
    %v1152 = vshrl.u32 %v1151, 7
    %v1153 = vsub.s32 %v886, %v1152
    %v1154 = vrot.slane %v573, %v1153
    %v1155 = vlaneseq
    %v1156 = vshrl.u32 %v1155, 7
    %v1157 = vsub.s32 %v886, %v1156
    %v1158 = vrot.slane %v576, %v1157
    %v1159 = vlaneseq
    %v1160 = vshrl.u32 %v1159, 7
    %v1161 = vsub.s32 %v886, %v1160
    %v1162 = vrot.slane %v579, %v1161
    %v1163 = vlaneseq
    %v1164 = vshrl.u32 %v1163, 7
    %v1165 = vsub.s32 %v886, %v1164
    %v1166 = vrot.slane %v582, %v1165
    %v1167 = vlaneseq
    %v1168 = vshrl.u32 %v1167, 7
    %v1169 = vsub.s32 %v886, %v1168
    %v1170 = vrot.slane %v585, %v1169
    %v1171 = vlaneseq
    %v1172 = vshrl.u32 %v1171, 7
    %v1173 = vsub.s32 %v886, %v1172
    %v1174 = vrot.slane %v588, %v1173
    %v1175 = vlaneseq
    %v1176 = vshrl.u32 %v1175, 7
    %v1177 = vsub.s32 %v886, %v1176
    %v1178 = vrot.slane %v591, %v1177
    %v1179 = vlaneseq
    %v1180 = vshrl.u32 %v1179, 7
    %v1181 = vsub.s32 %v886, %v1180
    %v1182 = vrot.slane %v594, %v1181
    %v1183 = vlaneseq
    %v1184 = vshrl.u32 %v1183, 7
    %v1185 = vsub.s32 %v886, %v1184
    %v1186 = vrot.slane %v597, %v1185
    %v1187 = vlaneseq
    %v1188 = vshrl.u32 %v1187, 7
    %v1189 = vsub.s32 %v886, %v1188
    %v1190 = vrot.slane %v600, %v1189
    %v1191 = vlaneseq
    %v1192 = vshrl.u32 %v1191, 7
    %v1193 = vsub.s32 %v886, %v1192
    %v1194 = vrot.slane %v603, %v1193
    %v1195 = vlaneseq
    %v1196 = vshrl.u32 %v1195, 7
    %v1197 = vsub.s32 %v886, %v1196
    %v1198 = vrot.slane %v606, %v1197
    %v1199 = vlaneseq
    %v1200 = vshrl.u32 %v1199, 7
    %v1201 = vsub.s32 %v886, %v1200
    %v1202 = vrot.slane %v609, %v1201
    %v1203 = vlaneseq
    %v1204 = vshrl.u32 %v1203, 7
    %v1205 = vsub.s32 %v886, %v1204
    %v1206 = vrot.slane %v612, %v1205
    %v1207 = vlaneseq
    %v1208 = vshrl.u32 %v1207, 7
    %v1209 = vsub.s32 %v886, %v1208
    %v1210 = vrot.slane %v615, %v1209
    %v1211 = vlaneseq
    %v1212 = vshrl.u32 %v1211, 7
    %v1213 = vsub.s32 %v886, %v1212
    %v1214 = vrot.slane %v618, %v1213
    %v1215 = vlaneseq
    %v1216 = vshrl.u32 %v1215, 7
    %v1217 = vsub.s32 %v886, %v1216
    %v1218 = vrot.slane %v621, %v1217
    %v1219 = vlaneseq
    %v1220 = vshrl.u32 %v1219, 7
    %v1221 = vsub.s32 %v886, %v1220
    %v1222 = vrot.slane %v624, %v1221
    %v1223 = vlaneseq
    %v1224 = vshrl.u32 %v1223, 7
    %v1225 = vsub.s32 %v886, %v1224
    %v1226 = vrot.slane %v627, %v1225
    %v1227 = vlaneseq
    %v1228 = vshrl.u32 %v1227, 7
    %v1229 = vsub.s32 %v886, %v1228
    %v1230 = vrot.slane %v630, %v1229
    %v1231 = vlaneseq
    %v1232 = vshrl.u32 %v1231, 7
    %v1233 = vsub.s32 %v886, %v1232
    %v1234 = vrot.slane %v633, %v1233
    %v1235 = vlaneseq
    %v1236 = vshrl.u32 %v1235, 7
    %v1237 = vsub.s32 %v886, %v1236
    %v1238 = vrot.slane %v636, %v1237
    %v1239 = vlaneseq
    %v1240 = vshrl.u32 %v1239, 7
    %v1241 = vsub.s32 %v886, %v1240
    %v1242 = vrot.slane %v639, %v1241
    %v1243 = vlaneseq
    %v1244 = vshrl.u32 %v1243, 7
    %v1245 = vsub.s32 %v886, %v1244
    %v1246 = vrot.slane %v642, %v1245
    %v1247 = vlaneseq
    %v1248 = vshrl.u32 %v1247, 7
    %v1249 = vsub.s32 %v886, %v1248
    %v1250 = vrot.slane %v645, %v1249
    %v1251 = vlaneseq
    %v1252 = vshrl.u32 %v1251, 7
    %v1253 = vsub.s32 %v886, %v1252
    %v1254 = vrot.slane %v648, %v1253
    %v1255 = vlaneseq
    %v1256 = vshrl.u32 %v1255, 7
    %v1257 = vsub.s32 %v886, %v1256
    %v1258 = vrot.slane %v651, %v1257
    %v1259 = vlaneseq
    %v1260 = vshrl.u32 %v1259, 7
    %v1261 = vsub.s32 %v886, %v1260
    %v1262 = vrot.slane %v654, %v1261
    %v1263 = vlaneseq
    %v1264 = vshrl.u32 %v1263, 7
    %v1265 = vsub.s32 %v886, %v1264
    %v1266 = vrot.slane %v657, %v1265
    %v1267 = vlaneseq
    %v1268 = vshrl.u32 %v1267, 7
    %v1269 = vsub.s32 %v886, %v1268
    %v1270 = vrot.slane %v660, %v1269
    %v1271 = vlaneseq
    %v1272 = vshrl.u32 %v1271, 7
    %v1273 = vsub.s32 %v886, %v1272
    %v1274 = vrot.slane %v663, %v1273
    %v1275 = vlaneseq
    %v1276 = vshrl.u32 %v1275, 7
    %v1277 = vsub.s32 %v886, %v1276
    %v1278 = vrot.slane %v666, %v1277
    %v1279 = vlaneseq
    %v1280 = vshrl.u32 %v1279, 7
    %v1281 = vsub.s32 %v886, %v1280
    %v1282 = vrot.slane %v669, %v1281
    %v1283 = vlaneseq
    %v1284 = vshrl.u32 %v1283, 7
    %v1285 = vsub.s32 %v886, %v1284
    %v1286 = vrot.slane %v672, %v1285
    %v1287 = vlaneseq
    %v1288 = vshrl.u32 %v1287, 7
    %v1289 = vsub.s32 %v886, %v1288
    %v1290 = vrot.slane %v675, %v1289
    %v1291 = vlaneseq
    %v1292 = vshrl.u32 %v1291, 7
    %v1293 = vsub.s32 %v886, %v1292
    %v1294 = vrot.slane %v678, %v1293
    %v1295 = vlaneseq
    %v1296 = vshrl.u32 %v1295, 7
    %v1297 = vsub.s32 %v886, %v1296
    %v1298 = vrot.slane %v681, %v1297
    %v1299 = vlaneseq
    %v1300 = vshrl.u32 %v1299, 7
    %v1301 = vsub.s32 %v886, %v1300
    %v1302 = vrot.slane %v684, %v1301
    %v1303 = vlaneseq
    %v1304 = vshrl.u32 %v1303, 7
    %v1305 = vsub.s32 %v886, %v1304
    %v1306 = vrot.slane %v687, %v1305
    %v1307 = vlaneseq
    %v1308 = vshrl.u32 %v1307, 7
    %v1309 = vsub.s32 %v886, %v1308
    %v1310 = vrot.slane %v690, %v1309
    %v1311 = vlaneseq
    %v1312 = vshrl.u32 %v1311, 7
    %v1313 = vsub.s32 %v886, %v1312
    %v1314 = vrot.slane %v693, %v1313
    %v1315 = vlaneseq
    %v1316 = vshrl.u32 %v1315, 7
    %v1317 = vsub.s32 %v886, %v1316
    %v1318 = vrot.slane %v696, %v1317
    %v1319 = vlaneseq
    %v1320 = vshrl.u32 %v1319, 7
    %v1321 = vsub.s32 %v886, %v1320
    %v1322 = vrot.slane %v699, %v1321
    %v1323 = vlaneseq
    %v1324 = vshrl.u32 %v1323, 7
    %v1325 = vsub.s32 %v886, %v1324
    %v1326 = vrot.slane %v702, %v1325
    %v1327 = vlaneseq
    %v1328 = vshrl.u32 %v1327, 7
    %v1329 = vsub.s32 %v886, %v1328
    %v1330 = vrot.slane %v705, %v1329
    %v1331 = vlaneseq
    %v1332 = vshrl.u32 %v1331, 7
    %v1333 = vsub.s32 %v886, %v1332
    %v1334 = vrot.slane %v708, %v1333
    %v1335 = vlaneseq
    %v1336 = vshrl.u32 %v1335, 7
    %v1337 = vsub.s32 %v886, %v1336
    %v1338 = vrot.slane %v711, %v1337
    %v1339 = vlaneseq
    %v1340 = vshrl.u32 %v1339, 7
    %v1341 = vsub.s32 %v886, %v1340
    %v1342 = vrot.slane %v714, %v1341
    %v1343 = vlaneseq
    %v1344 = vshrl.u32 %v1343, 7
    %v1345 = vsub.s32 %v886, %v1344
    %v1346 = vrot.slane %v717, %v1345
    %v1347 = vlaneseq
    %v1348 = vshrl.u32 %v1347, 7
    %v1349 = vsub.s32 %v886, %v1348
    %v1350 = vrot.slane %v720, %v1349
    %v1351 = vlaneseq
    %v1352 = vshrl.u32 %v1351, 7
    %v1353 = vsub.s32 %v886, %v1352
    %v1354 = vrot.slane %v723, %v1353
    %v1355 = vlaneseq
    %v1356 = vshrl.u32 %v1355, 7
    %v1357 = vsub.s32 %v886, %v1356
    %v1358 = vrot.slane %v726, %v1357
    %v1359 = vlaneseq
    %v1360 = vshrl.u32 %v1359, 7
    %v1361 = vsub.s32 %v886, %v1360
    %v1362 = vrot.slane %v729, %v1361
    %v1363 = vlaneseq
    %v1364 = vshrl.u32 %v1363, 7
    %v1365 = vsub.s32 %v886, %v1364
    %v1366 = vrot.slane %v732, %v1365
    %v1367 = vlaneseq
    %v1368 = vshrl.u32 %v1367, 7
    %v1369 = vsub.s32 %v886, %v1368
    %v1370 = vrot.slane %v735, %v1369
    %v1371 = vlaneseq
    %v1372 = vshrl.u32 %v1371, 7
    %v1373 = vsub.s32 %v886, %v1372
    %v1374 = vrot.slane %v738, %v1373
    %v1375 = vlaneseq
    %v1376 = vshrl.u32 %v1375, 7
    %v1377 = vsub.s32 %v886, %v1376
    %v1378 = vrot.slane %v741, %v1377
    %v1379 = vlaneseq
    %v1380 = vshrl.u32 %v1379, 7
    %v1381 = vsub.s32 %v886, %v1380
    %v1382 = vrot.slane %v744, %v1381
    %v1383 = vlaneseq
    %v1384 = vshrl.u32 %v1383, 7
    %v1385 = vsub.s32 %v886, %v1384
    %v1386 = vrot.slane %v747, %v1385
    %v1387 = vlaneseq
    %v1388 = vshrl.u32 %v1387, 7
    %v1389 = vsub.s32 %v886, %v1388
    %v1390 = vrot.slane %v750, %v1389
    %v1391 = vlaneseq
    %v1392 = vshrl.u32 %v1391, 7
    %v1393 = vsub.s32 %v886, %v1392
    %v1394 = vrot.slane %v753, %v1393
    %v1395 = vlaneseq
    %v1396 = vshrl.u32 %v1395, 7
    %v1397 = vsub.s32 %v886, %v1396
    %v1398 = vrot.slane %v756, %v1397
    %vm1399 = vcmask 1041409
    %v1400 = vsel %vm1399, %v894, %v890
    %vm1401 = vcmask 1042434
    %v1402 = vsel %vm1401, %v898, %v1400
    %vm1403 = vcmask 1043459
    %v1404 = vsel %vm1403, %v902, %v1402
    %vm1405 = vcmask 1044484
    %v1406 = vsel %vm1405, %v906, %v1404
    %vm1407 = vcmask 1045509
    %v1408 = vsel %vm1407, %v910, %v1406
    %vm1409 = vcmask 1046534
    %v1410 = vsel %vm1409, %v914, %v1408
    %vm1411 = vcmask 1047559
    %v1412 = vsel %vm1411, %v918, %v1410
    %v1413 = vsel %vm1399, %v926, %v922
    %v1414 = vsel %vm1401, %v930, %v1413
    %v1415 = vsel %vm1403, %v934, %v1414
    %v1416 = vsel %vm1405, %v938, %v1415
    %v1417 = vsel %vm1407, %v942, %v1416
    %v1418 = vsel %vm1409, %v946, %v1417
    %v1419 = vsel %vm1411, %v950, %v1418
    %v1420 = vsel %vm1399, %v958, %v954
    %v1421 = vsel %vm1401, %v962, %v1420
    %v1422 = vsel %vm1403, %v966, %v1421
    %v1423 = vsel %vm1405, %v970, %v1422
    %v1424 = vsel %vm1407, %v974, %v1423
    %v1425 = vsel %vm1409, %v978, %v1424
    %v1426 = vsel %vm1411, %v982, %v1425
    %v1427 = vsel %vm1399, %v990, %v986
    %v1428 = vsel %vm1401, %v994, %v1427
    %v1429 = vsel %vm1403, %v998, %v1428
    %v1430 = vsel %vm1405, %v1002, %v1429
    %v1431 = vsel %vm1407, %v1006, %v1430
    %v1432 = vsel %vm1409, %v1010, %v1431
    %v1433 = vsel %vm1411, %v1014, %v1432
    %v1434 = vsel %vm1399, %v1022, %v1018
    %v1435 = vsel %vm1401, %v1026, %v1434
    %v1436 = vsel %vm1403, %v1030, %v1435
    %v1437 = vsel %vm1405, %v1034, %v1436
    %v1438 = vsel %vm1407, %v1038, %v1437
    %v1439 = vsel %vm1409, %v1042, %v1438
    %v1440 = vsel %vm1411, %v1046, %v1439
    %v1441 = vsel %vm1399, %v1054, %v1050
    %v1442 = vsel %vm1401, %v1058, %v1441
    %v1443 = vsel %vm1403, %v1062, %v1442
    %v1444 = vsel %vm1405, %v1066, %v1443
    %v1445 = vsel %vm1407, %v1070, %v1444
    %v1446 = vsel %vm1409, %v1074, %v1445
    %v1447 = vsel %vm1411, %v1078, %v1446
    %v1448 = vsel %vm1399, %v1086, %v1082
    %v1449 = vsel %vm1401, %v1090, %v1448
    %v1450 = vsel %vm1403, %v1094, %v1449
    %v1451 = vsel %vm1405, %v1098, %v1450
    %v1452 = vsel %vm1407, %v1102, %v1451
    %v1453 = vsel %vm1409, %v1106, %v1452
    %v1454 = vsel %vm1411, %v1110, %v1453
    %v1455 = vsel %vm1399, %v1118, %v1114
    %v1456 = vsel %vm1401, %v1122, %v1455
    %v1457 = vsel %vm1403, %v1126, %v1456
    %v1458 = vsel %vm1405, %v1130, %v1457
    %v1459 = vsel %vm1407, %v1134, %v1458
    %v1460 = vsel %vm1409, %v1138, %v1459
    %v1461 = vsel %vm1411, %v1142, %v1460
    %v1462 = vsel %vm1399, %v1150, %v1146
    %v1463 = vsel %vm1401, %v1154, %v1462
    %v1464 = vsel %vm1403, %v1158, %v1463
    %v1465 = vsel %vm1405, %v1162, %v1464
    %v1466 = vsel %vm1407, %v1166, %v1465
    %v1467 = vsel %vm1409, %v1170, %v1466
    %v1468 = vsel %vm1411, %v1174, %v1467
    %v1469 = vsel %vm1399, %v1182, %v1178
    %v1470 = vsel %vm1401, %v1186, %v1469
    %v1471 = vsel %vm1403, %v1190, %v1470
    %v1472 = vsel %vm1405, %v1194, %v1471
    %v1473 = vsel %vm1407, %v1198, %v1472
    %v1474 = vsel %vm1409, %v1202, %v1473
    %v1475 = vsel %vm1411, %v1206, %v1474
    %v1476 = vsel %vm1399, %v1214, %v1210
    %v1477 = vsel %vm1401, %v1218, %v1476
    %v1478 = vsel %vm1403, %v1222, %v1477
    %v1479 = vsel %vm1405, %v1226, %v1478
    %v1480 = vsel %vm1407, %v1230, %v1479
    %v1481 = vsel %vm1409, %v1234, %v1480
    %v1482 = vsel %vm1411, %v1238, %v1481
    %v1483 = vsel %vm1399, %v1246, %v1242
    %v1484 = vsel %vm1401, %v1250, %v1483
    %v1485 = vsel %vm1403, %v1254, %v1484
    %v1486 = vsel %vm1405, %v1258, %v1485
    %v1487 = vsel %vm1407, %v1262, %v1486
    %v1488 = vsel %vm1409, %v1266, %v1487
    %v1489 = vsel %vm1411, %v1270, %v1488
    %v1490 = vsel %vm1399, %v1278, %v1274
    %v1491 = vsel %vm1401, %v1282, %v1490
    %v1492 = vsel %vm1403, %v1286, %v1491
    %v1493 = vsel %vm1405, %v1290, %v1492
    %v1494 = vsel %vm1407, %v1294, %v1493
    %v1495 = vsel %vm1409, %v1298, %v1494
    %v1496 = vsel %vm1411, %v1302, %v1495
    %v1497 = vsel %vm1399, %v1310, %v1306
    %v1498 = vsel %vm1401, %v1314, %v1497
    %v1499 = vsel %vm1403, %v1318, %v1498
    %v1500 = vsel %vm1405, %v1322, %v1499
    %v1501 = vsel %vm1407, %v1326, %v1500
    %v1502 = vsel %vm1409, %v1330, %v1501
    %v1503 = vsel %vm1411, %v1334, %v1502
    %v1504 = vsel %vm1399, %v1342, %v1338
    %v1505 = vsel %vm1401, %v1346, %v1504
    %v1506 = vsel %vm1403, %v1350, %v1505
    %v1507 = vsel %vm1405, %v1354, %v1506
    %v1508 = vsel %vm1407, %v1358, %v1507
    %v1509 = vsel %vm1409, %v1362, %v1508
    %v1510 = vsel %vm1411, %v1366, %v1509
    %v1511 = vsel %vm1399, %v1374, %v1370
    %v1512 = vsel %vm1401, %v1378, %v1511
    %v1513 = vsel %vm1403, %v1382, %v1512
    %v1514 = vsel %vm1405, %v1386, %v1513
    %v1515 = vsel %vm1407, %v1390, %v1514
    %v1516 = vsel %vm1409, %v1394, %v1515
    %v1517 = vsel %vm1411, %v1398, %v1516
    %1534 = vxpose.xlu0.b32.start [1/16] %v1412, 128
    %1535 = vxpose.xlu0.b32.cont [2/16] %v1419, 128
    %1536 = vxpose.xlu0.b32.cont [3/16] %v1426, 128
    %1537 = vxpose.xlu0.b32.cont [4/16] %v1433, 128
    %1538 = vxpose.xlu0.b32.cont [5/16] %v1440, 128
    %1539 = vxpose.xlu0.b32.cont [6/16] %v1447, 128
    %1540 = vxpose.xlu0.b32.cont [7/16] %v1454, 128
    %1541 = vxpose.xlu0.b32.cont [8/16] %v1461, 128
    %1542 = vxpose.xlu0.b32.cont [9/16] %v1468, 128
    %1543 = vxpose.xlu0.b32.cont [10/16] %v1475, 128
    %1544 = vxpose.xlu0.b32.cont [11/16] %v1482, 128
    %1545 = vxpose.xlu0.b32.cont [12/16] %v1489, 128
    %1546 = vxpose.xlu0.b32.cont [13/16] %v1496, 128
    %1547 = vxpose.xlu0.b32.cont [14/16] %v1503, 128
    %1548 = vxpose.xlu0.b32.cont [15/16] %v1510, 128
    %1549 = vxpose.xlu0.b32.end [16/16] %v1517, 128
    %v1550 = vpop.trf.xlu0
    %v1551 = vpop.trf.xlu0
    %v1552 = vpop.trf.xlu0
    %v1553 = vpop.trf.xlu0
    %v1554 = vpop.trf.xlu0
    %v1555 = vpop.trf.xlu0
    %v1556 = vpop.trf.xlu0
    %v1557 = vpop.trf.xlu0
    %v1558 = vpop.trf.xlu0
    %v1559 = vpop.trf.xlu0
    %v1560 = vpop.trf.xlu0
    %v1561 = vpop.trf.xlu0
    %v1562 = vpop.trf.xlu0
    %v1563 = vpop.trf.xlu0
    %v1564 = vpop.trf.xlu0
    %v1565 = vpop.trf.xlu0
    %v1566 = vld [vmem:[%s2] sm:$0xff]
    %vm1567 = vcmp.ne.s32.totalorder %v1566, 0
    %v1568 = vsel %vm1567, -1e+30, %v1550
    %s1569 = smul.u32 0, 128
    %s1570 = sshra.s32 %s1569, 7
    %s1571 = sand.u32 %s1569, 127
    %s1572 = scalar_lea.vmem [#allocation6], %s1570
    %1573 = vst [vmem:[%s1572] sm:$0xff] %v1568
    %v1574 = vld [vmem:[#allocation3] sm:$0xff]
    %1575 = vmax.xlane.f32.xlu0 %v1568
    %v1576 = vpop.xlane.xlu0 %1575
    %v1577 = vmax.f32 %v1574, %v1576
    %v1578 = vsub.f32 %v1574, %v1577
    %v1579 = vmul.f32 %v1578, 1.442695
    %v1580 = vpow.pop %v1579
    %1582 = vset.pattern.permute.xlu0 0
    %1583 = vperm.xlu0 %1582, %v1577
    %v1584 = vpop.permute.xlu0 %1583
    %v1586 = vsub.f32 %v1568, %v1584
    %v1587 = vmul.f32 %v1586, 1.442695
    %v1588 = vpow.pop %v1587
    %v1589 = vld [vmem:[#allocation4] sm:$0xff]
    %v1590 = vmul.f32 %v1580, %v1589
    %1591 = vadd.xlane.f32.xlu0 %v1588
    %v1592 = vpop.xlane.xlu0 %1591
    %v1593 = vadd.f32 %v1590, %v1592
    %vm1594 = vcmask 7168
    %1595 = vst.msk [vmem:[#allocation4] sm:$0xff] %vm1594, %v1593
    %v1596 = vld [vmem:[#allocation5] sm:$0xff]
    %1598 = vset.pattern.permute.xlu0 0
    %1599 = vperm.xlu0 %1598, %v1580
    %v1600 = vpop.permute.xlu0 %1599
    %v1602 = vmul.f32 %v1600, %v1596
    %1603 = vxpose.xlu0.b32.start [1/16] %v1588, 128
    %1604 = vxpose.xlu0.b32.cont [2/16] 0.0, 128
    %1605 = vxpose.xlu0.b32.cont [3/16] 0.0, 128
    %1606 = vxpose.xlu0.b32.cont [4/16] 0.0, 128
    %1607 = vxpose.xlu0.b32.cont [5/16] 0.0, 128
    %1608 = vxpose.xlu0.b32.cont [6/16] 0.0, 128
    %1609 = vxpose.xlu0.b32.cont [7/16] 0.0, 128
    %1610 = vxpose.xlu0.b32.cont [8/16] 0.0, 128
    %1611 = vxpose.xlu0.b32.cont [9/16] 0.0, 128
    %1612 = vxpose.xlu0.b32.cont [10/16] 0.0, 128
    %1613 = vxpose.xlu0.b32.cont [11/16] 0.0, 128
    %1614 = vxpose.xlu0.b32.cont [12/16] 0.0, 128
    %1615 = vxpose.xlu0.b32.cont [13/16] 0.0, 128
    %1616 = vxpose.xlu0.b32.cont [14/16] 0.0, 128
    %1617 = vxpose.xlu0.b32.cont [15/16] 0.0, 128
    %1618 = vxpose.xlu0.b32.end [16/16] 0.0, 128
    %v1619 = vpop.trf.xlu0
    %v1620 = vpop.trf.xlu0
    %v1621 = vpop.trf.xlu0
    %v1622 = vpop.trf.xlu0
    %v1623 = vpop.trf.xlu0
    %v1624 = vpop.trf.xlu0
    %v1625 = vpop.trf.xlu0
    %v1626 = vpop.trf.xlu0
    %v1627 = vpop.trf.xlu0
    %v1628 = vpop.trf.xlu0
    %v1629 = vpop.trf.xlu0
    %v1630 = vpop.trf.xlu0
    %v1631 = vpop.trf.xlu0
    %v1632 = vpop.trf.xlu0
    %v1633 = vpop.trf.xlu0
    %v1634 = vpop.trf.xlu0
    %v1635 = vlaneseq
    %v1636 = vshrl.u32 %v1635, 7
    %v1637 = vsub.s32 0, %v1636
    %v1638 = vrot.slane %v1619, %v1637
    %1640 = vbcast.lane.b32.xlu0 %v1638, 256
    %v1641 = vpop.permute.xlu0 %1640
    %v1642 = vlaneseq
    %v1643 = vshrl.u32 %v1642, 7
    %v1644 = vsub.s32 1, %v1643
    %v1645 = vrot.slane %v1619, %v1644
    %1647 = vbcast.lane.b32.xlu0 %v1645, 256
    %v1648 = vpop.permute.xlu0 %1647
    %v1649 = vlaneseq
    %v1650 = vshrl.u32 %v1649, 7
    %v1651 = vsub.s32 2, %v1650
    %v1652 = vrot.slane %v1619, %v1651
    %1654 = vbcast.lane.b32.xlu0 %v1652, 256
    %v1655 = vpop.permute.xlu0 %1654
    %v1656 = vlaneseq
    %v1657 = vshrl.u32 %v1656, 7
    %v1658 = vsub.s32 3, %v1657
    %v1659 = vrot.slane %v1619, %v1658
    %1661 = vbcast.lane.b32.xlu0 %v1659, 256
    %v1662 = vpop.permute.xlu0 %1661
    %v1663 = vlaneseq
    %v1664 = vshrl.u32 %v1663, 7
    %v1665 = vsub.s32 4, %v1664
    %v1666 = vrot.slane %v1619, %v1665
    %1668 = vbcast.lane.b32.xlu0 %v1666, 256
    %v1669 = vpop.permute.xlu0 %1668
    %v1670 = vlaneseq
    %v1671 = vshrl.u32 %v1670, 7
    %v1672 = vsub.s32 5, %v1671
    %v1673 = vrot.slane %v1619, %v1672
    %1675 = vbcast.lane.b32.xlu0 %v1673, 256
    %v1676 = vpop.permute.xlu0 %1675
    %v1677 = vlaneseq
    %v1678 = vshrl.u32 %v1677, 7
    %v1679 = vsub.s32 6, %v1678
    %v1680 = vrot.slane %v1619, %v1679
    %1682 = vbcast.lane.b32.xlu0 %v1680, 256
    %v1683 = vpop.permute.xlu0 %1682
    %v1684 = vlaneseq
    %v1685 = vshrl.u32 %v1684, 7
    %v1686 = vsub.s32 7, %v1685
    %v1687 = vrot.slane %v1619, %v1686
    %1689 = vbcast.lane.b32.xlu0 %v1687, 256
    %v1690 = vpop.permute.xlu0 %1689
    %v1691 = vlaneseq
    %v1692 = vshrl.u32 %v1691, 7
    %v1693 = vsub.s32 0, %v1692
    %v1694 = vrot.slane %v1620, %v1693
    %1696 = vbcast.lane.b32.xlu0 %v1694, 256
    %v1697 = vpop.permute.xlu0 %1696
    %v1698 = vlaneseq
    %v1699 = vshrl.u32 %v1698, 7
    %v1700 = vsub.s32 1, %v1699
    %v1701 = vrot.slane %v1620, %v1700
    %1703 = vbcast.lane.b32.xlu0 %v1701, 256
    %v1704 = vpop.permute.xlu0 %1703
    %v1705 = vlaneseq
    %v1706 = vshrl.u32 %v1705, 7
    %v1707 = vsub.s32 2, %v1706
    %v1708 = vrot.slane %v1620, %v1707
    %1710 = vbcast.lane.b32.xlu0 %v1708, 256
    %v1711 = vpop.permute.xlu0 %1710
    %v1712 = vlaneseq
    %v1713 = vshrl.u32 %v1712, 7
    %v1714 = vsub.s32 3, %v1713
    %v1715 = vrot.slane %v1620, %v1714
    %1717 = vbcast.lane.b32.xlu0 %v1715, 256
    %v1718 = vpop.permute.xlu0 %1717
    %v1719 = vlaneseq
    %v1720 = vshrl.u32 %v1719, 7
    %v1721 = vsub.s32 4, %v1720
    %v1722 = vrot.slane %v1620, %v1721
    %1724 = vbcast.lane.b32.xlu0 %v1722, 256
    %v1725 = vpop.permute.xlu0 %1724
    %v1726 = vlaneseq
    %v1727 = vshrl.u32 %v1726, 7
    %v1728 = vsub.s32 5, %v1727
    %v1729 = vrot.slane %v1620, %v1728
    %1731 = vbcast.lane.b32.xlu0 %v1729, 256
    %v1732 = vpop.permute.xlu0 %1731
    %v1733 = vlaneseq
    %v1734 = vshrl.u32 %v1733, 7
    %v1735 = vsub.s32 6, %v1734
    %v1736 = vrot.slane %v1620, %v1735
    %1738 = vbcast.lane.b32.xlu0 %v1736, 256
    %v1739 = vpop.permute.xlu0 %1738
    %v1740 = vlaneseq
    %v1741 = vshrl.u32 %v1740, 7
    %v1742 = vsub.s32 7, %v1741
    %v1743 = vrot.slane %v1620, %v1742
    %1745 = vbcast.lane.b32.xlu0 %v1743, 256
    %v1746 = vpop.permute.xlu0 %1745
    %v1747 = vlaneseq
    %v1748 = vshrl.u32 %v1747, 7
    %v1749 = vsub.s32 0, %v1748
    %v1750 = vrot.slane %v1621, %v1749
    %1752 = vbcast.lane.b32.xlu0 %v1750, 256
    %v1753 = vpop.permute.xlu0 %1752
    %v1754 = vlaneseq
    %v1755 = vshrl.u32 %v1754, 7
    %v1756 = vsub.s32 1, %v1755
    %v1757 = vrot.slane %v1621, %v1756
    %1759 = vbcast.lane.b32.xlu0 %v1757, 256
    %v1760 = vpop.permute.xlu0 %1759
    %v1761 = vlaneseq
    %v1762 = vshrl.u32 %v1761, 7
    %v1763 = vsub.s32 2, %v1762
    %v1764 = vrot.slane %v1621, %v1763
    %1766 = vbcast.lane.b32.xlu0 %v1764, 256
    %v1767 = vpop.permute.xlu0 %1766
    %v1768 = vlaneseq
    %v1769 = vshrl.u32 %v1768, 7
    %v1770 = vsub.s32 3, %v1769
    %v1771 = vrot.slane %v1621, %v1770
    %1773 = vbcast.lane.b32.xlu0 %v1771, 256
    %v1774 = vpop.permute.xlu0 %1773
    %v1775 = vlaneseq
    %v1776 = vshrl.u32 %v1775, 7
    %v1777 = vsub.s32 4, %v1776
    %v1778 = vrot.slane %v1621, %v1777
    %1780 = vbcast.lane.b32.xlu0 %v1778, 256
    %v1781 = vpop.permute.xlu0 %1780
    %v1782 = vlaneseq
    %v1783 = vshrl.u32 %v1782, 7
    %v1784 = vsub.s32 5, %v1783
    %v1785 = vrot.slane %v1621, %v1784
    %1787 = vbcast.lane.b32.xlu0 %v1785, 256
    %v1788 = vpop.permute.xlu0 %1787
    %v1789 = vlaneseq
    %v1790 = vshrl.u32 %v1789, 7
    %v1791 = vsub.s32 6, %v1790
    %v1792 = vrot.slane %v1621, %v1791
    %1794 = vbcast.lane.b32.xlu0 %v1792, 256
    %v1795 = vpop.permute.xlu0 %1794
    %v1796 = vlaneseq
    %v1797 = vshrl.u32 %v1796, 7
    %v1798 = vsub.s32 7, %v1797
    %v1799 = vrot.slane %v1621, %v1798
    %1801 = vbcast.lane.b32.xlu0 %v1799, 256
    %v1802 = vpop.permute.xlu0 %1801
    %v1803 = vlaneseq
    %v1804 = vshrl.u32 %v1803, 7
    %v1805 = vsub.s32 0, %v1804
    %v1806 = vrot.slane %v1622, %v1805
    %1808 = vbcast.lane.b32.xlu0 %v1806, 256
    %v1809 = vpop.permute.xlu0 %1808
    %v1810 = vlaneseq
    %v1811 = vshrl.u32 %v1810, 7
    %v1812 = vsub.s32 1, %v1811
    %v1813 = vrot.slane %v1622, %v1812
    %1815 = vbcast.lane.b32.xlu0 %v1813, 256
    %v1816 = vpop.permute.xlu0 %1815
    %v1817 = vlaneseq
    %v1818 = vshrl.u32 %v1817, 7
    %v1819 = vsub.s32 2, %v1818
    %v1820 = vrot.slane %v1622, %v1819
    %1822 = vbcast.lane.b32.xlu0 %v1820, 256
    %v1823 = vpop.permute.xlu0 %1822
    %v1824 = vlaneseq
    %v1825 = vshrl.u32 %v1824, 7
    %v1826 = vsub.s32 3, %v1825
    %v1827 = vrot.slane %v1622, %v1826
    %1829 = vbcast.lane.b32.xlu0 %v1827, 256
    %v1830 = vpop.permute.xlu0 %1829
    %v1831 = vlaneseq
    %v1832 = vshrl.u32 %v1831, 7
    %v1833 = vsub.s32 4, %v1832
    %v1834 = vrot.slane %v1622, %v1833
    %1836 = vbcast.lane.b32.xlu0 %v1834, 256
    %v1837 = vpop.permute.xlu0 %1836
    %v1838 = vlaneseq
    %v1839 = vshrl.u32 %v1838, 7
    %v1840 = vsub.s32 5, %v1839
    %v1841 = vrot.slane %v1622, %v1840
    %1843 = vbcast.lane.b32.xlu0 %v1841, 256
    %v1844 = vpop.permute.xlu0 %1843
    %v1845 = vlaneseq
    %v1846 = vshrl.u32 %v1845, 7
    %v1847 = vsub.s32 6, %v1846
    %v1848 = vrot.slane %v1622, %v1847
    %1850 = vbcast.lane.b32.xlu0 %v1848, 256
    %v1851 = vpop.permute.xlu0 %1850
    %v1852 = vlaneseq
    %v1853 = vshrl.u32 %v1852, 7
    %v1854 = vsub.s32 7, %v1853
    %v1855 = vrot.slane %v1622, %v1854
    %1857 = vbcast.lane.b32.xlu0 %v1855, 256
    %v1858 = vpop.permute.xlu0 %1857
    %v1859 = vlaneseq
    %v1860 = vshrl.u32 %v1859, 7
    %v1861 = vsub.s32 0, %v1860
    %v1862 = vrot.slane %v1623, %v1861
    %1864 = vbcast.lane.b32.xlu0 %v1862, 256
    %v1865 = vpop.permute.xlu0 %1864
    %v1866 = vlaneseq
    %v1867 = vshrl.u32 %v1866, 7
    %v1868 = vsub.s32 1, %v1867
    %v1869 = vrot.slane %v1623, %v1868
    %1871 = vbcast.lane.b32.xlu0 %v1869, 256
    %v1872 = vpop.permute.xlu0 %1871
    %v1873 = vlaneseq
    %v1874 = vshrl.u32 %v1873, 7
    %v1875 = vsub.s32 2, %v1874
    %v1876 = vrot.slane %v1623, %v1875
    %1878 = vbcast.lane.b32.xlu0 %v1876, 256
    %v1879 = vpop.permute.xlu0 %1878
    %v1880 = vlaneseq
    %v1881 = vshrl.u32 %v1880, 7
    %v1882 = vsub.s32 3, %v1881
    %v1883 = vrot.slane %v1623, %v1882
    %1885 = vbcast.lane.b32.xlu0 %v1883, 256
    %v1886 = vpop.permute.xlu0 %1885
    %v1887 = vlaneseq
    %v1888 = vshrl.u32 %v1887, 7
    %v1889 = vsub.s32 4, %v1888
    %v1890 = vrot.slane %v1623, %v1889
    %1892 = vbcast.lane.b32.xlu0 %v1890, 256
    %v1893 = vpop.permute.xlu0 %1892
    %v1894 = vlaneseq
    %v1895 = vshrl.u32 %v1894, 7
    %v1896 = vsub.s32 5, %v1895
    %v1897 = vrot.slane %v1623, %v1896
    %1899 = vbcast.lane.b32.xlu0 %v1897, 256
    %v1900 = vpop.permute.xlu0 %1899
    %v1901 = vlaneseq
    %v1902 = vshrl.u32 %v1901, 7
    %v1903 = vsub.s32 6, %v1902
    %v1904 = vrot.slane %v1623, %v1903
    %1906 = vbcast.lane.b32.xlu0 %v1904, 256
    %v1907 = vpop.permute.xlu0 %1906
    %v1908 = vlaneseq
    %v1909 = vshrl.u32 %v1908, 7
    %v1910 = vsub.s32 7, %v1909
    %v1911 = vrot.slane %v1623, %v1910
    %1913 = vbcast.lane.b32.xlu0 %v1911, 256
    %v1914 = vpop.permute.xlu0 %1913
    %v1915 = vlaneseq
    %v1916 = vshrl.u32 %v1915, 7
    %v1917 = vsub.s32 0, %v1916
    %v1918 = vrot.slane %v1624, %v1917
    %1920 = vbcast.lane.b32.xlu0 %v1918, 256
    %v1921 = vpop.permute.xlu0 %1920
    %v1922 = vlaneseq
    %v1923 = vshrl.u32 %v1922, 7
    %v1924 = vsub.s32 1, %v1923
    %v1925 = vrot.slane %v1624, %v1924
    %1927 = vbcast.lane.b32.xlu0 %v1925, 256
    %v1928 = vpop.permute.xlu0 %1927
    %v1929 = vlaneseq
    %v1930 = vshrl.u32 %v1929, 7
    %v1931 = vsub.s32 2, %v1930
    %v1932 = vrot.slane %v1624, %v1931
    %1934 = vbcast.lane.b32.xlu0 %v1932, 256
    %v1935 = vpop.permute.xlu0 %1934
    %v1936 = vlaneseq
    %v1937 = vshrl.u32 %v1936, 7
    %v1938 = vsub.s32 3, %v1937
    %v1939 = vrot.slane %v1624, %v1938
    %1941 = vbcast.lane.b32.xlu0 %v1939, 256
    %v1942 = vpop.permute.xlu0 %1941
    %v1943 = vlaneseq
    %v1944 = vshrl.u32 %v1943, 7
    %v1945 = vsub.s32 4, %v1944
    %v1946 = vrot.slane %v1624, %v1945
    %1948 = vbcast.lane.b32.xlu0 %v1946, 256
    %v1949 = vpop.permute.xlu0 %1948
    %v1950 = vlaneseq
    %v1951 = vshrl.u32 %v1950, 7
    %v1952 = vsub.s32 5, %v1951
    %v1953 = vrot.slane %v1624, %v1952
    %1955 = vbcast.lane.b32.xlu0 %v1953, 256
    %v1956 = vpop.permute.xlu0 %1955
    %v1957 = vlaneseq
    %v1958 = vshrl.u32 %v1957, 7
    %v1959 = vsub.s32 6, %v1958
    %v1960 = vrot.slane %v1624, %v1959
    %1962 = vbcast.lane.b32.xlu0 %v1960, 256
    %v1963 = vpop.permute.xlu0 %1962
    %v1964 = vlaneseq
    %v1965 = vshrl.u32 %v1964, 7
    %v1966 = vsub.s32 7, %v1965
    %v1967 = vrot.slane %v1624, %v1966
    %1969 = vbcast.lane.b32.xlu0 %v1967, 256
    %v1970 = vpop.permute.xlu0 %1969
    %v1971 = vlaneseq
    %v1972 = vshrl.u32 %v1971, 7
    %v1973 = vsub.s32 0, %v1972
    %v1974 = vrot.slane %v1625, %v1973
    %1976 = vbcast.lane.b32.xlu0 %v1974, 256
    %v1977 = vpop.permute.xlu0 %1976
    %v1978 = vlaneseq
    %v1979 = vshrl.u32 %v1978, 7
    %v1980 = vsub.s32 1, %v1979
    %v1981 = vrot.slane %v1625, %v1980
    %1983 = vbcast.lane.b32.xlu0 %v1981, 256
    %v1984 = vpop.permute.xlu0 %1983
    %v1985 = vlaneseq
    %v1986 = vshrl.u32 %v1985, 7
    %v1987 = vsub.s32 2, %v1986
    %v1988 = vrot.slane %v1625, %v1987
    %1990 = vbcast.lane.b32.xlu0 %v1988, 256
    %v1991 = vpop.permute.xlu0 %1990
    %v1992 = vlaneseq
    %v1993 = vshrl.u32 %v1992, 7
    %v1994 = vsub.s32 3, %v1993
    %v1995 = vrot.slane %v1625, %v1994
    %1997 = vbcast.lane.b32.xlu0 %v1995, 256
    %v1998 = vpop.permute.xlu0 %1997
    %v1999 = vlaneseq
    %v2000 = vshrl.u32 %v1999, 7
    %v2001 = vsub.s32 4, %v2000
    %v2002 = vrot.slane %v1625, %v2001
    %2004 = vbcast.lane.b32.xlu0 %v2002, 256
    %v2005 = vpop.permute.xlu0 %2004
    %v2006 = vlaneseq
    %v2007 = vshrl.u32 %v2006, 7
    %v2008 = vsub.s32 5, %v2007
    %v2009 = vrot.slane %v1625, %v2008
    %2011 = vbcast.lane.b32.xlu0 %v2009, 256
    %v2012 = vpop.permute.xlu0 %2011
    %v2013 = vlaneseq
    %v2014 = vshrl.u32 %v2013, 7
    %v2015 = vsub.s32 6, %v2014
    %v2016 = vrot.slane %v1625, %v2015
    %2018 = vbcast.lane.b32.xlu0 %v2016, 256
    %v2019 = vpop.permute.xlu0 %2018
    %v2020 = vlaneseq
    %v2021 = vshrl.u32 %v2020, 7
    %v2022 = vsub.s32 7, %v2021
    %v2023 = vrot.slane %v1625, %v2022
    %2025 = vbcast.lane.b32.xlu0 %v2023, 256
    %v2026 = vpop.permute.xlu0 %2025
    %v2027 = vlaneseq
    %v2028 = vshrl.u32 %v2027, 7
    %v2029 = vsub.s32 0, %v2028
    %v2030 = vrot.slane %v1626, %v2029
    %2032 = vbcast.lane.b32.xlu0 %v2030, 256
    %v2033 = vpop.permute.xlu0 %2032
    %v2034 = vlaneseq
    %v2035 = vshrl.u32 %v2034, 7
    %v2036 = vsub.s32 1, %v2035
    %v2037 = vrot.slane %v1626, %v2036
    %2039 = vbcast.lane.b32.xlu0 %v2037, 256
    %v2040 = vpop.permute.xlu0 %2039
    %v2041 = vlaneseq
    %v2042 = vshrl.u32 %v2041, 7
    %v2043 = vsub.s32 2, %v2042
    %v2044 = vrot.slane %v1626, %v2043
    %2046 = vbcast.lane.b32.xlu0 %v2044, 256
    %v2047 = vpop.permute.xlu0 %2046
    %v2048 = vlaneseq
    %v2049 = vshrl.u32 %v2048, 7
    %v2050 = vsub.s32 3, %v2049
    %v2051 = vrot.slane %v1626, %v2050
    %2053 = vbcast.lane.b32.xlu0 %v2051, 256
    %v2054 = vpop.permute.xlu0 %2053
    %v2055 = vlaneseq
    %v2056 = vshrl.u32 %v2055, 7
    %v2057 = vsub.s32 4, %v2056
    %v2058 = vrot.slane %v1626, %v2057
    %2060 = vbcast.lane.b32.xlu0 %v2058, 256
    %v2061 = vpop.permute.xlu0 %2060
    %v2062 = vlaneseq
    %v2063 = vshrl.u32 %v2062, 7
    %v2064 = vsub.s32 5, %v2063
    %v2065 = vrot.slane %v1626, %v2064
    %2067 = vbcast.lane.b32.xlu0 %v2065, 256
    %v2068 = vpop.permute.xlu0 %2067
    %v2069 = vlaneseq
    %v2070 = vshrl.u32 %v2069, 7
    %v2071 = vsub.s32 6, %v2070
    %v2072 = vrot.slane %v1626, %v2071
    %2074 = vbcast.lane.b32.xlu0 %v2072, 256
    %v2075 = vpop.permute.xlu0 %2074
    %v2076 = vlaneseq
    %v2077 = vshrl.u32 %v2076, 7
    %v2078 = vsub.s32 7, %v2077
    %v2079 = vrot.slane %v1626, %v2078
    %2081 = vbcast.lane.b32.xlu0 %v2079, 256
    %v2082 = vpop.permute.xlu0 %2081
    %v2083 = vlaneseq
    %v2084 = vshrl.u32 %v2083, 7
    %v2085 = vsub.s32 0, %v2084
    %v2086 = vrot.slane %v1627, %v2085
    %2088 = vbcast.lane.b32.xlu0 %v2086, 256
    %v2089 = vpop.permute.xlu0 %2088
    %v2090 = vlaneseq
    %v2091 = vshrl.u32 %v2090, 7
    %v2092 = vsub.s32 1, %v2091
    %v2093 = vrot.slane %v1627, %v2092
    %2095 = vbcast.lane.b32.xlu0 %v2093, 256
    %v2096 = vpop.permute.xlu0 %2095
    %v2097 = vlaneseq
    %v2098 = vshrl.u32 %v2097, 7
    %v2099 = vsub.s32 2, %v2098
    %v2100 = vrot.slane %v1627, %v2099
    %2102 = vbcast.lane.b32.xlu0 %v2100, 256
    %v2103 = vpop.permute.xlu0 %2102
    %v2104 = vlaneseq
    %v2105 = vshrl.u32 %v2104, 7
    %v2106 = vsub.s32 3, %v2105
    %v2107 = vrot.slane %v1627, %v2106
    %2109 = vbcast.lane.b32.xlu0 %v2107, 256
    %v2110 = vpop.permute.xlu0 %2109
    %v2111 = vlaneseq
    %v2112 = vshrl.u32 %v2111, 7
    %v2113 = vsub.s32 4, %v2112
    %v2114 = vrot.slane %v1627, %v2113
    %2116 = vbcast.lane.b32.xlu0 %v2114, 256
    %v2117 = vpop.permute.xlu0 %2116
    %v2118 = vlaneseq
    %v2119 = vshrl.u32 %v2118, 7
    %v2120 = vsub.s32 5, %v2119
    %v2121 = vrot.slane %v1627, %v2120
    %2123 = vbcast.lane.b32.xlu0 %v2121, 256
    %v2124 = vpop.permute.xlu0 %2123
    %v2125 = vlaneseq
    %v2126 = vshrl.u32 %v2125, 7
    %v2127 = vsub.s32 6, %v2126
    %v2128 = vrot.slane %v1627, %v2127
    %2130 = vbcast.lane.b32.xlu0 %v2128, 256
    %v2131 = vpop.permute.xlu0 %2130
    %v2132 = vlaneseq
    %v2133 = vshrl.u32 %v2132, 7
    %v2134 = vsub.s32 7, %v2133
    %v2135 = vrot.slane %v1627, %v2134
    %2137 = vbcast.lane.b32.xlu0 %v2135, 256
    %v2138 = vpop.permute.xlu0 %2137
    %v2139 = vlaneseq
    %v2140 = vshrl.u32 %v2139, 7
    %v2141 = vsub.s32 0, %v2140
    %v2142 = vrot.slane %v1628, %v2141
    %2144 = vbcast.lane.b32.xlu0 %v2142, 256
    %v2145 = vpop.permute.xlu0 %2144
    %v2146 = vlaneseq
    %v2147 = vshrl.u32 %v2146, 7
    %v2148 = vsub.s32 1, %v2147
    %v2149 = vrot.slane %v1628, %v2148
    %2151 = vbcast.lane.b32.xlu0 %v2149, 256
    %v2152 = vpop.permute.xlu0 %2151
    %v2153 = vlaneseq
    %v2154 = vshrl.u32 %v2153, 7
    %v2155 = vsub.s32 2, %v2154
    %v2156 = vrot.slane %v1628, %v2155
    %2158 = vbcast.lane.b32.xlu0 %v2156, 256
    %v2159 = vpop.permute.xlu0 %2158
    %v2160 = vlaneseq
    %v2161 = vshrl.u32 %v2160, 7
    %v2162 = vsub.s32 3, %v2161
    %v2163 = vrot.slane %v1628, %v2162
    %2165 = vbcast.lane.b32.xlu0 %v2163, 256
    %v2166 = vpop.permute.xlu0 %2165
    %v2167 = vlaneseq
    %v2168 = vshrl.u32 %v2167, 7
    %v2169 = vsub.s32 4, %v2168
    %v2170 = vrot.slane %v1628, %v2169
    %2172 = vbcast.lane.b32.xlu0 %v2170, 256
    %v2173 = vpop.permute.xlu0 %2172
    %v2174 = vlaneseq
    %v2175 = vshrl.u32 %v2174, 7
    %v2176 = vsub.s32 5, %v2175
    %v2177 = vrot.slane %v1628, %v2176
    %2179 = vbcast.lane.b32.xlu0 %v2177, 256
    %v2180 = vpop.permute.xlu0 %2179
    %v2181 = vlaneseq
    %v2182 = vshrl.u32 %v2181, 7
    %v2183 = vsub.s32 6, %v2182
    %v2184 = vrot.slane %v1628, %v2183
    %2186 = vbcast.lane.b32.xlu0 %v2184, 256
    %v2187 = vpop.permute.xlu0 %2186
    %v2188 = vlaneseq
    %v2189 = vshrl.u32 %v2188, 7
    %v2190 = vsub.s32 7, %v2189
    %v2191 = vrot.slane %v1628, %v2190
    %2193 = vbcast.lane.b32.xlu0 %v2191, 256
    %v2194 = vpop.permute.xlu0 %2193
    %v2195 = vlaneseq
    %v2196 = vshrl.u32 %v2195, 7
    %v2197 = vsub.s32 0, %v2196
    %v2198 = vrot.slane %v1629, %v2197
    %2200 = vbcast.lane.b32.xlu0 %v2198, 256
    %v2201 = vpop.permute.xlu0 %2200
    %v2202 = vlaneseq
    %v2203 = vshrl.u32 %v2202, 7
    %v2204 = vsub.s32 1, %v2203
    %v2205 = vrot.slane %v1629, %v2204
    %2207 = vbcast.lane.b32.xlu0 %v2205, 256
    %v2208 = vpop.permute.xlu0 %2207
    %v2209 = vlaneseq
    %v2210 = vshrl.u32 %v2209, 7
    %v2211 = vsub.s32 2, %v2210
    %v2212 = vrot.slane %v1629, %v2211
    %2214 = vbcast.lane.b32.xlu0 %v2212, 256
    %v2215 = vpop.permute.xlu0 %2214
    %v2216 = vlaneseq
    %v2217 = vshrl.u32 %v2216, 7
    %v2218 = vsub.s32 3, %v2217
    %v2219 = vrot.slane %v1629, %v2218
    %2221 = vbcast.lane.b32.xlu0 %v2219, 256
    %v2222 = vpop.permute.xlu0 %2221
    %v2223 = vlaneseq
    %v2224 = vshrl.u32 %v2223, 7
    %v2225 = vsub.s32 4, %v2224
    %v2226 = vrot.slane %v1629, %v2225
    %2228 = vbcast.lane.b32.xlu0 %v2226, 256
    %v2229 = vpop.permute.xlu0 %2228
    %v2230 = vlaneseq
    %v2231 = vshrl.u32 %v2230, 7
    %v2232 = vsub.s32 5, %v2231
    %v2233 = vrot.slane %v1629, %v2232
    %2235 = vbcast.lane.b32.xlu0 %v2233, 256
    %v2236 = vpop.permute.xlu0 %2235
    %v2237 = vlaneseq
    %v2238 = vshrl.u32 %v2237, 7
    %v2239 = vsub.s32 6, %v2238
    %v2240 = vrot.slane %v1629, %v2239
    %2242 = vbcast.lane.b32.xlu0 %v2240, 256
    %v2243 = vpop.permute.xlu0 %2242
    %v2244 = vlaneseq
    %v2245 = vshrl.u32 %v2244, 7
    %v2246 = vsub.s32 7, %v2245
    %v2247 = vrot.slane %v1629, %v2246
    %2249 = vbcast.lane.b32.xlu0 %v2247, 256
    %v2250 = vpop.permute.xlu0 %2249
    %v2251 = vlaneseq
    %v2252 = vshrl.u32 %v2251, 7
    %v2253 = vsub.s32 0, %v2252
    %v2254 = vrot.slane %v1630, %v2253
    %2256 = vbcast.lane.b32.xlu0 %v2254, 256
    %v2257 = vpop.permute.xlu0 %2256
    %v2258 = vlaneseq
    %v2259 = vshrl.u32 %v2258, 7
    %v2260 = vsub.s32 1, %v2259
    %v2261 = vrot.slane %v1630, %v2260
    %2263 = vbcast.lane.b32.xlu0 %v2261, 256
    %v2264 = vpop.permute.xlu0 %2263
    %v2265 = vlaneseq
    %v2266 = vshrl.u32 %v2265, 7
    %v2267 = vsub.s32 2, %v2266
    %v2268 = vrot.slane %v1630, %v2267
    %2270 = vbcast.lane.b32.xlu0 %v2268, 256
    %v2271 = vpop.permute.xlu0 %2270
    %v2272 = vlaneseq
    %v2273 = vshrl.u32 %v2272, 7
    %v2274 = vsub.s32 3, %v2273
    %v2275 = vrot.slane %v1630, %v2274
    %2277 = vbcast.lane.b32.xlu0 %v2275, 256
    %v2278 = vpop.permute.xlu0 %2277
    %v2279 = vlaneseq
    %v2280 = vshrl.u32 %v2279, 7
    %v2281 = vsub.s32 4, %v2280
    %v2282 = vrot.slane %v1630, %v2281
    %2284 = vbcast.lane.b32.xlu0 %v2282, 256
    %v2285 = vpop.permute.xlu0 %2284
    %v2286 = vlaneseq
    %v2287 = vshrl.u32 %v2286, 7
    %v2288 = vsub.s32 5, %v2287
    %v2289 = vrot.slane %v1630, %v2288
    %2291 = vbcast.lane.b32.xlu0 %v2289, 256
    %v2292 = vpop.permute.xlu0 %2291
    %v2293 = vlaneseq
    %v2294 = vshrl.u32 %v2293, 7
    %v2295 = vsub.s32 6, %v2294
    %v2296 = vrot.slane %v1630, %v2295
    %2298 = vbcast.lane.b32.xlu0 %v2296, 256
    %v2299 = vpop.permute.xlu0 %2298
    %v2300 = vlaneseq
    %v2301 = vshrl.u32 %v2300, 7
    %v2302 = vsub.s32 7, %v2301
    %v2303 = vrot.slane %v1630, %v2302
    %2305 = vbcast.lane.b32.xlu0 %v2303, 256
    %v2306 = vpop.permute.xlu0 %2305
    %v2307 = vlaneseq
    %v2308 = vshrl.u32 %v2307, 7
    %v2309 = vsub.s32 0, %v2308
    %v2310 = vrot.slane %v1631, %v2309
    %2312 = vbcast.lane.b32.xlu0 %v2310, 256
    %v2313 = vpop.permute.xlu0 %2312
    %v2314 = vlaneseq
    %v2315 = vshrl.u32 %v2314, 7
    %v2316 = vsub.s32 1, %v2315
    %v2317 = vrot.slane %v1631, %v2316
    %2319 = vbcast.lane.b32.xlu0 %v2317, 256
    %v2320 = vpop.permute.xlu0 %2319
    %v2321 = vlaneseq
    %v2322 = vshrl.u32 %v2321, 7
    %v2323 = vsub.s32 2, %v2322
    %v2324 = vrot.slane %v1631, %v2323
    %2326 = vbcast.lane.b32.xlu0 %v2324, 256
    %v2327 = vpop.permute.xlu0 %2326
    %v2328 = vlaneseq
    %v2329 = vshrl.u32 %v2328, 7
    %v2330 = vsub.s32 3, %v2329
    %v2331 = vrot.slane %v1631, %v2330
    %2333 = vbcast.lane.b32.xlu0 %v2331, 256
    %v2334 = vpop.permute.xlu0 %2333
    %v2335 = vlaneseq
    %v2336 = vshrl.u32 %v2335, 7
    %v2337 = vsub.s32 4, %v2336
    %v2338 = vrot.slane %v1631, %v2337
    %2340 = vbcast.lane.b32.xlu0 %v2338, 256
    %v2341 = vpop.permute.xlu0 %2340
    %v2342 = vlaneseq
    %v2343 = vshrl.u32 %v2342, 7
    %v2344 = vsub.s32 5, %v2343
    %v2345 = vrot.slane %v1631, %v2344
    %2347 = vbcast.lane.b32.xlu0 %v2345, 256
    %v2348 = vpop.permute.xlu0 %2347
    %v2349 = vlaneseq
    %v2350 = vshrl.u32 %v2349, 7
    %v2351 = vsub.s32 6, %v2350
    %v2352 = vrot.slane %v1631, %v2351
    %2354 = vbcast.lane.b32.xlu0 %v2352, 256
    %v2355 = vpop.permute.xlu0 %2354
    %v2356 = vlaneseq
    %v2357 = vshrl.u32 %v2356, 7
    %v2358 = vsub.s32 7, %v2357
    %v2359 = vrot.slane %v1631, %v2358
    %2361 = vbcast.lane.b32.xlu0 %v2359, 256
    %v2362 = vpop.permute.xlu0 %2361
    %v2363 = vlaneseq
    %v2364 = vshrl.u32 %v2363, 7
    %v2365 = vsub.s32 0, %v2364
    %v2366 = vrot.slane %v1632, %v2365
    %2368 = vbcast.lane.b32.xlu0 %v2366, 256
    %v2369 = vpop.permute.xlu0 %2368
    %v2370 = vlaneseq
    %v2371 = vshrl.u32 %v2370, 7
    %v2372 = vsub.s32 1, %v2371
    %v2373 = vrot.slane %v1632, %v2372
    %2375 = vbcast.lane.b32.xlu0 %v2373, 256
    %v2376 = vpop.permute.xlu0 %2375
    %v2377 = vlaneseq
    %v2378 = vshrl.u32 %v2377, 7
    %v2379 = vsub.s32 2, %v2378
    %v2380 = vrot.slane %v1632, %v2379
    %2382 = vbcast.lane.b32.xlu0 %v2380, 256
    %v2383 = vpop.permute.xlu0 %2382
    %v2384 = vlaneseq
    %v2385 = vshrl.u32 %v2384, 7
    %v2386 = vsub.s32 3, %v2385
    %v2387 = vrot.slane %v1632, %v2386
    %2389 = vbcast.lane.b32.xlu0 %v2387, 256
    %v2390 = vpop.permute.xlu0 %2389
    %v2391 = vlaneseq
    %v2392 = vshrl.u32 %v2391, 7
    %v2393 = vsub.s32 4, %v2392
    %v2394 = vrot.slane %v1632, %v2393
    %2396 = vbcast.lane.b32.xlu0 %v2394, 256
    %v2397 = vpop.permute.xlu0 %2396
    %v2398 = vlaneseq
    %v2399 = vshrl.u32 %v2398, 7
    %v2400 = vsub.s32 5, %v2399
    %v2401 = vrot.slane %v1632, %v2400
    %2403 = vbcast.lane.b32.xlu0 %v2401, 256
    %v2404 = vpop.permute.xlu0 %2403
    %v2405 = vlaneseq
    %v2406 = vshrl.u32 %v2405, 7
    %v2407 = vsub.s32 6, %v2406
    %v2408 = vrot.slane %v1632, %v2407
    %2410 = vbcast.lane.b32.xlu0 %v2408, 256
    %v2411 = vpop.permute.xlu0 %2410
    %v2412 = vlaneseq
    %v2413 = vshrl.u32 %v2412, 7
    %v2414 = vsub.s32 7, %v2413
    %v2415 = vrot.slane %v1632, %v2414
    %2417 = vbcast.lane.b32.xlu0 %v2415, 256
    %v2418 = vpop.permute.xlu0 %2417
    %v2419 = vlaneseq
    %v2420 = vshrl.u32 %v2419, 7
    %v2421 = vsub.s32 0, %v2420
    %v2422 = vrot.slane %v1633, %v2421
    %2424 = vbcast.lane.b32.xlu0 %v2422, 256
    %v2425 = vpop.permute.xlu0 %2424
    %v2426 = vlaneseq
    %v2427 = vshrl.u32 %v2426, 7
    %v2428 = vsub.s32 1, %v2427
    %v2429 = vrot.slane %v1633, %v2428
    %2431 = vbcast.lane.b32.xlu0 %v2429, 256
    %v2432 = vpop.permute.xlu0 %2431
    %v2433 = vlaneseq
    %v2434 = vshrl.u32 %v2433, 7
    %v2435 = vsub.s32 2, %v2434
    %v2436 = vrot.slane %v1633, %v2435
    %2438 = vbcast.lane.b32.xlu0 %v2436, 256
    %v2439 = vpop.permute.xlu0 %2438
    %v2440 = vlaneseq
    %v2441 = vshrl.u32 %v2440, 7
    %v2442 = vsub.s32 3, %v2441
    %v2443 = vrot.slane %v1633, %v2442
    %2445 = vbcast.lane.b32.xlu0 %v2443, 256
    %v2446 = vpop.permute.xlu0 %2445
    %v2447 = vlaneseq
    %v2448 = vshrl.u32 %v2447, 7
    %v2449 = vsub.s32 4, %v2448
    %v2450 = vrot.slane %v1633, %v2449
    %2452 = vbcast.lane.b32.xlu0 %v2450, 256
    %v2453 = vpop.permute.xlu0 %2452
    %v2454 = vlaneseq
    %v2455 = vshrl.u32 %v2454, 7
    %v2456 = vsub.s32 5, %v2455
    %v2457 = vrot.slane %v1633, %v2456
    %2459 = vbcast.lane.b32.xlu0 %v2457, 256
    %v2460 = vpop.permute.xlu0 %2459
    %v2461 = vlaneseq
    %v2462 = vshrl.u32 %v2461, 7
    %v2463 = vsub.s32 6, %v2462
    %v2464 = vrot.slane %v1633, %v2463
    %2466 = vbcast.lane.b32.xlu0 %v2464, 256
    %v2467 = vpop.permute.xlu0 %2466
    %v2468 = vlaneseq
    %v2469 = vshrl.u32 %v2468, 7
    %v2470 = vsub.s32 7, %v2469
    %v2471 = vrot.slane %v1633, %v2470
    %2473 = vbcast.lane.b32.xlu0 %v2471, 256
    %v2474 = vpop.permute.xlu0 %2473
    %v2475 = vlaneseq
    %v2476 = vshrl.u32 %v2475, 7
    %v2477 = vsub.s32 0, %v2476
    %v2478 = vrot.slane %v1634, %v2477
    %2480 = vbcast.lane.b32.xlu0 %v2478, 256
    %v2481 = vpop.permute.xlu0 %2480
    %v2482 = vlaneseq
    %v2483 = vshrl.u32 %v2482, 7
    %v2484 = vsub.s32 1, %v2483
    %v2485 = vrot.slane %v1634, %v2484
    %2487 = vbcast.lane.b32.xlu0 %v2485, 256
    %v2488 = vpop.permute.xlu0 %2487
    %v2489 = vlaneseq
    %v2490 = vshrl.u32 %v2489, 7
    %v2491 = vsub.s32 2, %v2490
    %v2492 = vrot.slane %v1634, %v2491
    %2494 = vbcast.lane.b32.xlu0 %v2492, 256
    %v2495 = vpop.permute.xlu0 %2494
    %v2496 = vlaneseq
    %v2497 = vshrl.u32 %v2496, 7
    %v2498 = vsub.s32 3, %v2497
    %v2499 = vrot.slane %v1634, %v2498
    %2501 = vbcast.lane.b32.xlu0 %v2499, 256
    %v2502 = vpop.permute.xlu0 %2501
    %v2503 = vlaneseq
    %v2504 = vshrl.u32 %v2503, 7
    %v2505 = vsub.s32 4, %v2504
    %v2506 = vrot.slane %v1634, %v2505
    %2508 = vbcast.lane.b32.xlu0 %v2506, 256
    %v2509 = vpop.permute.xlu0 %2508
    %v2510 = vlaneseq
    %v2511 = vshrl.u32 %v2510, 7
    %v2512 = vsub.s32 5, %v2511
    %v2513 = vrot.slane %v1634, %v2512
    %2515 = vbcast.lane.b32.xlu0 %v2513, 256
    %v2516 = vpop.permute.xlu0 %2515
    %v2517 = vlaneseq
    %v2518 = vshrl.u32 %v2517, 7
    %v2519 = vsub.s32 6, %v2518
    %v2520 = vrot.slane %v1634, %v2519
    %2522 = vbcast.lane.b32.xlu0 %v2520, 256
    %v2523 = vpop.permute.xlu0 %2522
    %v2524 = vlaneseq
    %v2525 = vshrl.u32 %v2524, 7
    %v2526 = vsub.s32 7, %v2525
    %v2527 = vrot.slane %v1634, %v2526
    %2529 = vbcast.lane.b32.xlu0 %v2527, 256
    %v2530 = vpop.permute.xlu0 %2529
    %v2531 = vmul.f32 %v1641, %v115
    %v2532 = vmul.f32 %v1648, %v116
    %v2533 = vmul.f32 %v1655, %v117
    %v2534 = vmul.f32 %v1662, %v118
    %v2535 = vmul.f32 %v1669, %v119
    %v2536 = vmul.f32 %v1676, %v120
    %v2537 = vmul.f32 %v1683, %v121
    %v2538 = vmul.f32 %v1690, %v122
    %v2539 = vmul.f32 %v1697, %v123
    %v2540 = vmul.f32 %v1704, %v124
    %v2541 = vmul.f32 %v1711, %v125
    %v2542 = vmul.f32 %v1718, %v126
    %v2543 = vmul.f32 %v1725, %v127
    %v2544 = vmul.f32 %v1732, %v128
    %v2545 = vmul.f32 %v1739, %v129
    %v2546 = vmul.f32 %v1746, %v130
    %v2547 = vmul.f32 %v1753, %v131
    %v2548 = vmul.f32 %v1760, %v132
    %v2549 = vmul.f32 %v1767, %v133
    %v2550 = vmul.f32 %v1774, %v134
    %v2551 = vmul.f32 %v1781, %v135
    %v2552 = vmul.f32 %v1788, %v136
    %v2553 = vmul.f32 %v1795, %v137
    %v2554 = vmul.f32 %v1802, %v138
    %v2555 = vmul.f32 %v1809, %v139
    %v2556 = vmul.f32 %v1816, %v140
    %v2557 = vmul.f32 %v1823, %v141
    %v2558 = vmul.f32 %v1830, %v142
    %v2559 = vmul.f32 %v1837, %v143
    %v2560 = vmul.f32 %v1844, %v144
    %v2561 = vmul.f32 %v1851, %v145
    %v2562 = vmul.f32 %v1858, %v146
    %v2563 = vmul.f32 %v1865, %v147
    %v2564 = vmul.f32 %v1872, %v148
    %v2565 = vmul.f32 %v1879, %v149
    %v2566 = vmul.f32 %v1886, %v150
    %v2567 = vmul.f32 %v1893, %v151
    %v2568 = vmul.f32 %v1900, %v152
    %v2569 = vmul.f32 %v1907, %v153
    %v2570 = vmul.f32 %v1914, %v154
    %v2571 = vmul.f32 %v1921, %v155
    %v2572 = vmul.f32 %v1928, %v156
    %v2573 = vmul.f32 %v1935, %v157
    %v2574 = vmul.f32 %v1942, %v158
    %v2575 = vmul.f32 %v1949, %v159
    %v2576 = vmul.f32 %v1956, %v160
    %v2577 = vmul.f32 %v1963, %v161
    %v2578 = vmul.f32 %v1970, %v162
    %v2579 = vmul.f32 %v1977, %v163
    %v2580 = vmul.f32 %v1984, %v164
    %v2581 = vmul.f32 %v1991, %v165
    %v2582 = vmul.f32 %v1998, %v166
    %v2583 = vmul.f32 %v2005, %v167
    %v2584 = vmul.f32 %v2012, %v168
    %v2585 = vmul.f32 %v2019, %v169
    %v2586 = vmul.f32 %v2026, %v170
    %v2587 = vmul.f32 %v2033, %v171
    %v2588 = vmul.f32 %v2040, %v172
    %v2589 = vmul.f32 %v2047, %v173
    %v2590 = vmul.f32 %v2054, %v174
    %v2591 = vmul.f32 %v2061, %v175
    %v2592 = vmul.f32 %v2068, %v176
    %v2593 = vmul.f32 %v2075, %v177
    %v2594 = vmul.f32 %v2082, %v178
    %v2595 = vmul.f32 %v2089, %v179
    %v2596 = vmul.f32 %v2096, %v180
    %v2597 = vmul.f32 %v2103, %v181
    %v2598 = vmul.f32 %v2110, %v182
    %v2599 = vmul.f32 %v2117, %v183
    %v2600 = vmul.f32 %v2124, %v184
    %v2601 = vmul.f32 %v2131, %v185
    %v2602 = vmul.f32 %v2138, %v186
    %v2603 = vmul.f32 %v2145, %v187
    %v2604 = vmul.f32 %v2152, %v188
    %v2605 = vmul.f32 %v2159, %v189
    %v2606 = vmul.f32 %v2166, %v190
    %v2607 = vmul.f32 %v2173, %v191
    %v2608 = vmul.f32 %v2180, %v192
    %v2609 = vmul.f32 %v2187, %v193
    %v2610 = vmul.f32 %v2194, %v194
    %v2611 = vmul.f32 %v2201, %v195
    %v2612 = vmul.f32 %v2208, %v196
    %v2613 = vmul.f32 %v2215, %v197
    %v2614 = vmul.f32 %v2222, %v198
    %v2615 = vmul.f32 %v2229, %v199
    %v2616 = vmul.f32 %v2236, %v200
    %v2617 = vmul.f32 %v2243, %v201
    %v2618 = vmul.f32 %v2250, %v202
    %v2619 = vmul.f32 %v2257, %v203
    %v2620 = vmul.f32 %v2264, %v204
    %v2621 = vmul.f32 %v2271, %v205
    %v2622 = vmul.f32 %v2278, %v206
    %v2623 = vmul.f32 %v2285, %v207
    %v2624 = vmul.f32 %v2292, %v208
    %v2625 = vmul.f32 %v2299, %v209
    %v2626 = vmul.f32 %v2306, %v210
    %v2627 = vmul.f32 %v2313, %v211
    %v2628 = vmul.f32 %v2320, %v212
    %v2629 = vmul.f32 %v2327, %v213
    %v2630 = vmul.f32 %v2334, %v214
    %v2631 = vmul.f32 %v2341, %v215
    %v2632 = vmul.f32 %v2348, %v216
    %v2633 = vmul.f32 %v2355, %v217
    %v2634 = vmul.f32 %v2362, %v218
    %v2635 = vmul.f32 %v2369, %v219
    %v2636 = vmul.f32 %v2376, %v220
    %v2637 = vmul.f32 %v2383, %v221
    %v2638 = vmul.f32 %v2390, %v222
    %v2639 = vmul.f32 %v2397, %v223
    %v2640 = vmul.f32 %v2404, %v224
    %v2641 = vmul.f32 %v2411, %v225
    %v2642 = vmul.f32 %v2418, %v226
    %v2643 = vmul.f32 %v2425, %v227
    %v2644 = vmul.f32 %v2432, %v228
    %v2645 = vmul.f32 %v2439, %v229
    %v2646 = vmul.f32 %v2446, %v230
    %v2647 = vmul.f32 %v2453, %v231
    %v2648 = vmul.f32 %v2460, %v232
    %v2649 = vmul.f32 %v2467, %v233
    %v2650 = vmul.f32 %v2474, %v234
    %v2651 = vmul.f32 %v2481, %v235
    %v2652 = vmul.f32 %v2488, %v236
    %v2653 = vmul.f32 %v2495, %v237
    %v2654 = vmul.f32 %v2502, %v238
    %v2655 = vmul.f32 %v2509, %v239
    %v2656 = vmul.f32 %v2516, %v240
    %v2657 = vmul.f32 %v2523, %v241
    %v2658 = vmul.f32 %v2530, %v242
    %v2659 = vsel %vm372, %v2531, 0.0
    %v2660 = vsel %vm372, %v2532, 0.0
    %v2661 = vadd.f32 %v2659, %v2660
    %v2662 = vsel %vm372, %v2533, 0.0
    %v2663 = vadd.f32 %v2661, %v2662
    %v2664 = vsel %vm372, %v2534, 0.0
    %v2665 = vadd.f32 %v2663, %v2664
    %v2666 = vsel %vm372, %v2535, 0.0
    %v2667 = vadd.f32 %v2665, %v2666
    %v2668 = vsel %vm372, %v2536, 0.0
    %v2669 = vadd.f32 %v2667, %v2668
    %v2670 = vsel %vm372, %v2537, 0.0
    %v2671 = vadd.f32 %v2669, %v2670
    %v2672 = vsel %vm372, %v2538, 0.0
    %v2673 = vadd.f32 %v2671, %v2672
    %v2674 = vsel %vm372, %v2539, 0.0
    %v2675 = vadd.f32 %v2673, %v2674
    %v2676 = vsel %vm372, %v2540, 0.0
    %v2677 = vadd.f32 %v2675, %v2676
    %v2678 = vsel %vm372, %v2541, 0.0
    %v2679 = vadd.f32 %v2677, %v2678
    %v2680 = vsel %vm372, %v2542, 0.0
    %v2681 = vadd.f32 %v2679, %v2680
    %v2682 = vsel %vm372, %v2543, 0.0
    %v2683 = vadd.f32 %v2681, %v2682
    %v2684 = vsel %vm372, %v2544, 0.0
    %v2685 = vadd.f32 %v2683, %v2684
    %v2686 = vsel %vm372, %v2545, 0.0
    %v2687 = vadd.f32 %v2685, %v2686
    %v2688 = vsel %vm372, %v2546, 0.0
    %v2689 = vadd.f32 %v2687, %v2688
    %v2690 = vsel %vm372, %v2547, 0.0
    %v2691 = vadd.f32 %v2689, %v2690
    %v2692 = vsel %vm372, %v2548, 0.0
    %v2693 = vadd.f32 %v2691, %v2692
    %v2694 = vsel %vm372, %v2549, 0.0
    %v2695 = vadd.f32 %v2693, %v2694
    %v2696 = vsel %vm372, %v2550, 0.0
    %v2697 = vadd.f32 %v2695, %v2696
    %v2698 = vsel %vm372, %v2551, 0.0
    %v2699 = vadd.f32 %v2697, %v2698
    %v2700 = vsel %vm372, %v2552, 0.0
    %v2701 = vadd.f32 %v2699, %v2700
    %v2702 = vsel %vm372, %v2553, 0.0
    %v2703 = vadd.f32 %v2701, %v2702
    %v2704 = vsel %vm372, %v2554, 0.0
    %v2705 = vadd.f32 %v2703, %v2704
    %v2706 = vsel %vm372, %v2555, 0.0
    %v2707 = vadd.f32 %v2705, %v2706
    %v2708 = vsel %vm372, %v2556, 0.0
    %v2709 = vadd.f32 %v2707, %v2708
    %v2710 = vsel %vm372, %v2557, 0.0
    %v2711 = vadd.f32 %v2709, %v2710
    %v2712 = vsel %vm372, %v2558, 0.0
    %v2713 = vadd.f32 %v2711, %v2712
    %v2714 = vsel %vm372, %v2559, 0.0
    %v2715 = vadd.f32 %v2713, %v2714
    %v2716 = vsel %vm372, %v2560, 0.0
    %v2717 = vadd.f32 %v2715, %v2716
    %v2718 = vsel %vm372, %v2561, 0.0
    %v2719 = vadd.f32 %v2717, %v2718
    %v2720 = vsel %vm372, %v2562, 0.0
    %v2721 = vadd.f32 %v2719, %v2720
    %v2722 = vsel %vm372, %v2563, 0.0
    %v2723 = vadd.f32 %v2721, %v2722
    %v2724 = vsel %vm372, %v2564, 0.0
    %v2725 = vadd.f32 %v2723, %v2724
    %v2726 = vsel %vm372, %v2565, 0.0
    %v2727 = vadd.f32 %v2725, %v2726
    %v2728 = vsel %vm372, %v2566, 0.0
    %v2729 = vadd.f32 %v2727, %v2728
    %v2730 = vsel %vm372, %v2567, 0.0
    %v2731 = vadd.f32 %v2729, %v2730
    %v2732 = vsel %vm372, %v2568, 0.0
    %v2733 = vadd.f32 %v2731, %v2732
    %v2734 = vsel %vm372, %v2569, 0.0
    %v2735 = vadd.f32 %v2733, %v2734
    %v2736 = vsel %vm372, %v2570, 0.0
    %v2737 = vadd.f32 %v2735, %v2736
    %v2738 = vsel %vm372, %v2571, 0.0
    %v2739 = vadd.f32 %v2737, %v2738
    %v2740 = vsel %vm372, %v2572, 0.0
    %v2741 = vadd.f32 %v2739, %v2740
    %v2742 = vsel %vm372, %v2573, 0.0
    %v2743 = vadd.f32 %v2741, %v2742
    %v2744 = vsel %vm372, %v2574, 0.0
    %v2745 = vadd.f32 %v2743, %v2744
    %v2746 = vsel %vm372, %v2575, 0.0
    %v2747 = vadd.f32 %v2745, %v2746
    %v2748 = vsel %vm372, %v2576, 0.0
    %v2749 = vadd.f32 %v2747, %v2748
    %v2750 = vsel %vm372, %v2577, 0.0
    %v2751 = vadd.f32 %v2749, %v2750
    %v2752 = vsel %vm372, %v2578, 0.0
    %v2753 = vadd.f32 %v2751, %v2752
    %v2754 = vsel %vm372, %v2579, 0.0
    %v2755 = vadd.f32 %v2753, %v2754
    %v2756 = vsel %vm372, %v2580, 0.0
    %v2757 = vadd.f32 %v2755, %v2756
    %v2758 = vsel %vm372, %v2581, 0.0
    %v2759 = vadd.f32 %v2757, %v2758
    %v2760 = vsel %vm372, %v2582, 0.0
    %v2761 = vadd.f32 %v2759, %v2760
    %v2762 = vsel %vm372, %v2583, 0.0
    %v2763 = vadd.f32 %v2761, %v2762
    %v2764 = vsel %vm372, %v2584, 0.0
    %v2765 = vadd.f32 %v2763, %v2764
    %v2766 = vsel %vm372, %v2585, 0.0
    %v2767 = vadd.f32 %v2765, %v2766
    %v2768 = vsel %vm372, %v2586, 0.0
    %v2769 = vadd.f32 %v2767, %v2768
    %v2770 = vsel %vm372, %v2587, 0.0
    %v2771 = vadd.f32 %v2769, %v2770
    %v2772 = vsel %vm372, %v2588, 0.0
    %v2773 = vadd.f32 %v2771, %v2772
    %v2774 = vsel %vm372, %v2589, 0.0
    %v2775 = vadd.f32 %v2773, %v2774
    %v2776 = vsel %vm372, %v2590, 0.0
    %v2777 = vadd.f32 %v2775, %v2776
    %v2778 = vsel %vm372, %v2591, 0.0
    %v2779 = vadd.f32 %v2777, %v2778
    %v2780 = vsel %vm372, %v2592, 0.0
    %v2781 = vadd.f32 %v2779, %v2780
    %v2782 = vsel %vm372, %v2593, 0.0
    %v2783 = vadd.f32 %v2781, %v2782
    %v2784 = vsel %vm372, %v2594, 0.0
    %v2785 = vadd.f32 %v2783, %v2784
    %v2786 = vsel %vm372, %v2595, 0.0
    %v2787 = vadd.f32 %v2785, %v2786
    %v2788 = vsel %vm372, %v2596, 0.0
    %v2789 = vadd.f32 %v2787, %v2788
    %v2790 = vsel %vm372, %v2597, 0.0
    %v2791 = vadd.f32 %v2789, %v2790
    %v2792 = vsel %vm372, %v2598, 0.0
    %v2793 = vadd.f32 %v2791, %v2792
    %v2794 = vsel %vm372, %v2599, 0.0
    %v2795 = vadd.f32 %v2793, %v2794
    %v2796 = vsel %vm372, %v2600, 0.0
    %v2797 = vadd.f32 %v2795, %v2796
    %v2798 = vsel %vm372, %v2601, 0.0
    %v2799 = vadd.f32 %v2797, %v2798
    %v2800 = vsel %vm372, %v2602, 0.0
    %v2801 = vadd.f32 %v2799, %v2800
    %v2802 = vsel %vm372, %v2603, 0.0
    %v2803 = vadd.f32 %v2801, %v2802
    %v2804 = vsel %vm372, %v2604, 0.0
    %v2805 = vadd.f32 %v2803, %v2804
    %v2806 = vsel %vm372, %v2605, 0.0
    %v2807 = vadd.f32 %v2805, %v2806
    %v2808 = vsel %vm372, %v2606, 0.0
    %v2809 = vadd.f32 %v2807, %v2808
    %v2810 = vsel %vm372, %v2607, 0.0
    %v2811 = vadd.f32 %v2809, %v2810
    %v2812 = vsel %vm372, %v2608, 0.0
    %v2813 = vadd.f32 %v2811, %v2812
    %v2814 = vsel %vm372, %v2609, 0.0
    %v2815 = vadd.f32 %v2813, %v2814
    %v2816 = vsel %vm372, %v2610, 0.0
    %v2817 = vadd.f32 %v2815, %v2816
    %v2818 = vsel %vm372, %v2611, 0.0
    %v2819 = vadd.f32 %v2817, %v2818
    %v2820 = vsel %vm372, %v2612, 0.0
    %v2821 = vadd.f32 %v2819, %v2820
    %v2822 = vsel %vm372, %v2613, 0.0
    %v2823 = vadd.f32 %v2821, %v2822
    %v2824 = vsel %vm372, %v2614, 0.0
    %v2825 = vadd.f32 %v2823, %v2824
    %v2826 = vsel %vm372, %v2615, 0.0
    %v2827 = vadd.f32 %v2825, %v2826
    %v2828 = vsel %vm372, %v2616, 0.0
    %v2829 = vadd.f32 %v2827, %v2828
    %v2830 = vsel %vm372, %v2617, 0.0
    %v2831 = vadd.f32 %v2829, %v2830
    %v2832 = vsel %vm372, %v2618, 0.0
    %v2833 = vadd.f32 %v2831, %v2832
    %v2834 = vsel %vm372, %v2619, 0.0
    %v2835 = vadd.f32 %v2833, %v2834
    %v2836 = vsel %vm372, %v2620, 0.0
    %v2837 = vadd.f32 %v2835, %v2836
    %v2838 = vsel %vm372, %v2621, 0.0
    %v2839 = vadd.f32 %v2837, %v2838
    %v2840 = vsel %vm372, %v2622, 0.0
    %v2841 = vadd.f32 %v2839, %v2840
    %v2842 = vsel %vm372, %v2623, 0.0
    %v2843 = vadd.f32 %v2841, %v2842
    %v2844 = vsel %vm372, %v2624, 0.0
    %v2845 = vadd.f32 %v2843, %v2844
    %v2846 = vsel %vm372, %v2625, 0.0
    %v2847 = vadd.f32 %v2845, %v2846
    %v2848 = vsel %vm372, %v2626, 0.0
    %v2849 = vadd.f32 %v2847, %v2848
    %v2850 = vsel %vm372, %v2627, 0.0
    %v2851 = vadd.f32 %v2849, %v2850
    %v2852 = vsel %vm372, %v2628, 0.0
    %v2853 = vadd.f32 %v2851, %v2852
    %v2854 = vsel %vm372, %v2629, 0.0
    %v2855 = vadd.f32 %v2853, %v2854
    %v2856 = vsel %vm372, %v2630, 0.0
    %v2857 = vadd.f32 %v2855, %v2856
    %v2858 = vsel %vm372, %v2631, 0.0
    %v2859 = vadd.f32 %v2857, %v2858
    %v2860 = vsel %vm372, %v2632, 0.0
    %v2861 = vadd.f32 %v2859, %v2860
    %v2862 = vsel %vm372, %v2633, 0.0
    %v2863 = vadd.f32 %v2861, %v2862
    %v2864 = vsel %vm372, %v2634, 0.0
    %v2865 = vadd.f32 %v2863, %v2864
    %v2866 = vsel %vm372, %v2635, 0.0
    %v2867 = vadd.f32 %v2865, %v2866
    %v2868 = vsel %vm372, %v2636, 0.0
    %v2869 = vadd.f32 %v2867, %v2868
    %v2870 = vsel %vm372, %v2637, 0.0
    %v2871 = vadd.f32 %v2869, %v2870
    %v2872 = vsel %vm372, %v2638, 0.0
    %v2873 = vadd.f32 %v2871, %v2872
    %v2874 = vsel %vm372, %v2639, 0.0
    %v2875 = vadd.f32 %v2873, %v2874
    %v2876 = vsel %vm372, %v2640, 0.0
    %v2877 = vadd.f32 %v2875, %v2876
    %v2878 = vsel %vm372, %v2641, 0.0
    %v2879 = vadd.f32 %v2877, %v2878
    %v2880 = vsel %vm372, %v2642, 0.0
    %v2881 = vadd.f32 %v2879, %v2880
    %v2882 = vsel %vm372, %v2643, 0.0
    %v2883 = vadd.f32 %v2881, %v2882
    %v2884 = vsel %vm372, %v2644, 0.0
    %v2885 = vadd.f32 %v2883, %v2884
    %v2886 = vsel %vm372, %v2645, 0.0
    %v2887 = vadd.f32 %v2885, %v2886
    %v2888 = vsel %vm372, %v2646, 0.0
    %v2889 = vadd.f32 %v2887, %v2888
    %v2890 = vsel %vm372, %v2647, 0.0
    %v2891 = vadd.f32 %v2889, %v2890
    %v2892 = vsel %vm372, %v2648, 0.0
    %v2893 = vadd.f32 %v2891, %v2892
    %v2894 = vsel %vm372, %v2649, 0.0
    %v2895 = vadd.f32 %v2893, %v2894
    %v2896 = vsel %vm372, %v2650, 0.0
    %v2897 = vadd.f32 %v2895, %v2896
    %v2898 = vsel %vm372, %v2651, 0.0
    %v2899 = vadd.f32 %v2897, %v2898
    %v2900 = vsel %vm372, %v2652, 0.0
    %v2901 = vadd.f32 %v2899, %v2900
    %v2902 = vsel %vm372, %v2653, 0.0
    %v2903 = vadd.f32 %v2901, %v2902
    %v2904 = vsel %vm372, %v2654, 0.0
    %v2905 = vadd.f32 %v2903, %v2904
    %v2906 = vsel %vm372, %v2655, 0.0
    %v2907 = vadd.f32 %v2905, %v2906
    %v2908 = vsel %vm372, %v2656, 0.0
    %v2909 = vadd.f32 %v2907, %v2908
    %v2910 = vsel %vm372, %v2657, 0.0
    %v2911 = vadd.f32 %v2909, %v2910
    %v2912 = vsel %vm372, %v2658, 0.0
    %v2913 = vadd.f32 %v2911, %v2912
    %v2914 = vadd.f32 %v1602, %v2913
    %2915 = vst.msk [vmem:[#allocation5] sm:$0xff] %vm372, %v2914
    %2916 = vst.msk [vmem:[#allocation3] sm:$0xff] %vm1594, %v1577
    // Predicated region
    $region30: #{tpu_custom_call.1} parent=1 // pred_check
      %p2917 = pneg %p27
    $region31: #{tpu_custom_call.1} parent=1 // pred_check_branch
      %2919 = sbr.rel (%p2917) target = $region33
    $region32: #{tpu_custom_call.1} parent=1 // pred_region
      %v2920 = vld [vmem:[#allocation4] sm:$0xff]
      %v2921 = vrcp.pop %v2920
      %v2922 = vmul.f32 %v2920, %v2921
      %v2923 = vsub.f32 2.0, %v2922
      %v2924 = vmul.f32 %v2921, %v2923
      %v2925 = vld [vmem:[#allocation5] sm:$0xff]
      %2927 = vset.pattern.permute.xlu0 0
      %2928 = vperm.xlu0 %2927, %v2924
      %v2929 = vpop.permute.xlu0 %2928
      %v2931 = vmul.f32 %v2925, %v2929
      %v2932 = vld [vmem:[#allocation6] sm:$0xff]
      %v2933 = vld [vmem:[#allocation3] sm:$0xff]
      %2935 = vset.pattern.permute.xlu0 0
      %2936 = vperm.xlu0 %2935, %v2933
      %v2937 = vpop.permute.xlu0 %2936
      %v2939 = vsub.f32 %v2932, %v2937
      %v2940 = vmul.f32 %v2939, 1.442695
      %v2941 = vpow.pop %v2940
      %v2942 = vmul.f32 %v2941, %v2929
      %2943 = vst [vmem:[#allocation9] sm:$0xff] %v2942
      %v2944 = vld [vmem:[%s0] sm:$0xff]
      %v2945 = vld [vmem:[%s4] sm:$0xff]
      %v2946 = vld [vmem:[%s4 + $0x8] sm:$0xff]
      %v2947 = vld [vmem:[%s4 + $0x10] sm:$0xff]
      %v2948 = vld [vmem:[%s4 + $0x18] sm:$0xff]
      %v2949 = vld [vmem:[%s5] sm:$0xff]
      %v2950 = vld [vmem:[%s5 + $0x8] sm:$0xff]
      %v2951 = vld [vmem:[%s5 + $0x10] sm:$0xff]
      %v2952 = vld [vmem:[%s5 + $0x18] sm:$0xff]
      %v2954 = vsel %vm372, %v2931, 0
      %2956 = vmatprep.subr.mxu0 0.0
      %2957 = vmatpush1.msra.mxu0 0.0
      %2958 = vmatprep.subr.mxu0 0.0
      %2959 = vmatpush1.msra.mxu0 0.0
      %2960 = vmatprep.subr.mxu0 0.0
      %2961 = vmatpush1.msra.mxu0 0.0
      %2962 = vmatprep.subr.mxu0 0.0
      %2963 = vmatpush1.msra.mxu0 0.0
      %2964 = vmatprep.subr.mxu0 0.0
      %2965 = vmatpush1.msra.mxu0 0.0
      %2966 = vmatprep.subr.mxu0 0.0
      %2967 = vmatpush1.msra.mxu0 0.0
      %2968 = vmatprep.subr.mxu0 0.0
      %2969 = vmatpush1.msra.mxu0 0.0
      %2970 = vmatprep.subr.mxu0 0.0
      %2971 = vmatpush1.msra.mxu0 0.0
      %2972 = vmatprep.subr.mxu0 0.0
      %2973 = vmatpush1.msra.mxu0 0.0
      %2974 = vmatprep.subr.mxu0 0.0
      %2975 = vmatpush1.msra.mxu0 0.0
      %2976 = vmatprep.subr.mxu0 0.0
      %2977 = vmatpush1.msra.mxu0 0.0
      %2978 = vmatprep.subr.mxu0 0.0
      %2979 = vmatpush1.msra.mxu0 0.0
      %2980 = vmatprep.subr.mxu0 0.0
      %2981 = vmatpush1.msra.mxu0 %v2952
      %2982 = vmatprep.subr.mxu0 0.0
      %2983 = vmatpush1.msra.mxu0 %v2951
      %2984 = vmatprep.subr.mxu0 0.0
      %2985 = vmatpush1.msra.mxu0 %v2950
      %2986 = vmatprep.subr.mxu0 0.0
      %2987 = vmatpush1.msra.mxu0 %v2949
      %2988 = vmatprep.subr.mxu0 0.0
      %2989 = vmatpush2.msra.mxu0 0.0
      %2990 = vmatprep.subr.mxu0 0.0
      %2991 = vmatpush2.msra.mxu0 0.0
      %2992 = vmatprep.subr.mxu0 0.0
      %2993 = vmatpush2.msra.mxu0 0.0
      %2994 = vmatprep.subr.mxu0 0.0
      %2995 = vmatpush2.msra.mxu0 0.0
      %2996 = vmatprep.subr.mxu0 0.0
      %2997 = vmatpush2.msra.mxu0 0.0
      %2998 = vmatprep.subr.mxu0 0.0
      %2999 = vmatpush2.msra.mxu0 0.0
      %3000 = vmatprep.subr.mxu0 0.0
      %3001 = vmatpush2.msra.mxu0 0.0
      %3002 = vmatprep.subr.mxu0 0.0
      %3003 = vmatpush2.msra.mxu0 0.0
      %3004 = vmatprep.subr.mxu0 0.0
      %3005 = vmatpush2.msra.mxu0 0.0
      %3006 = vmatprep.subr.mxu0 0.0
      %3007 = vmatpush2.msra.mxu0 0.0
      %3008 = vmatprep.subr.mxu0 0.0
      %3009 = vmatpush2.msra.mxu0 0.0
      %3010 = vmatprep.subr.mxu0 0.0
      %3011 = vmatpush2.msra.mxu0 0.0
      %3012 = vmatprep.subr.mxu0 0.0
      %3013 = vmatpush2.msra.mxu0 0.0
      %3014 = vmatprep.subr.mxu0 0.0
      %3015 = vmatpush2.msra.mxu0 0.0
      %3016 = vmatprep.subr.mxu0 0.0
      %3017 = vmatpush2.msra.mxu0 0.0
      %3018 = vmatprep.subr.mxu0 0.0
      %3019 = vmatpush2.msra.mxu0 0.0
      %3020 = vmatprep.mubr.f32.mxu0 0.0
      %3021 = vmatmul.mubr.f32.gmra.mxu0 %v2954
      %v3022 = vpop.f32.mrf.mxu0
      %v3023 = vadd.f32 0.0, %v3022
      %v3024 = vpop.f32.mrf.mxu0
      %3025 = vdwg.mxu0
      %v3027 = vsel %vm372, %v2944, 0
      %3029 = vmatprep.subr.mxu0 0.0
      %3030 = vmatpush1.msra.mxu0 0.0
      %3031 = vmatprep.subr.mxu0 0.0
      %3032 = vmatpush1.msra.mxu0 0.0
      %3033 = vmatprep.subr.mxu0 0.0
      %3034 = vmatpush1.msra.mxu0 0.0
      %3035 = vmatprep.subr.mxu0 0.0
      %3036 = vmatpush1.msra.mxu0 0.0
      %3037 = vmatprep.subr.mxu0 0.0
      %3038 = vmatpush1.msra.mxu0 0.0
      %3039 = vmatprep.subr.mxu0 0.0
      %3040 = vmatpush1.msra.mxu0 0.0
      %3041 = vmatprep.subr.mxu0 0.0
      %3042 = vmatpush1.msra.mxu0 0.0
      %3043 = vmatprep.subr.mxu0 0.0
      %3044 = vmatpush1.msra.mxu0 0.0
      %3045 = vmatprep.subr.mxu0 0.0
      %3046 = vmatpush1.msra.mxu0 0.0
      %3047 = vmatprep.subr.mxu0 0.0
      %3048 = vmatpush1.msra.mxu0 0.0
      %3049 = vmatprep.subr.mxu0 0.0
      %3050 = vmatpush1.msra.mxu0 0.0
      %3051 = vmatprep.subr.mxu0 0.0
      %3052 = vmatpush1.msra.mxu0 0.0
      %3053 = vmatprep.subr.mxu0 0.0
      %3054 = vmatpush1.msra.mxu0 %v2948
      %3055 = vmatprep.subr.mxu0 0.0
      %3056 = vmatpush1.msra.mxu0 %v2947
      %3057 = vmatprep.subr.mxu0 0.0
      %3058 = vmatpush1.msra.mxu0 %v2946
      %3059 = vmatprep.subr.mxu0 0.0
      %3060 = vmatpush1.msra.mxu0 %v2945
      %3061 = vmatprep.subr.mxu0 0.0
      %3062 = vmatpush2.msra.mxu0 0.0
      %3063 = vmatprep.subr.mxu0 0.0
      %3064 = vmatpush2.msra.mxu0 0.0
      %3065 = vmatprep.subr.mxu0 0.0
      %3066 = vmatpush2.msra.mxu0 0.0
      %3067 = vmatprep.subr.mxu0 0.0
      %3068 = vmatpush2.msra.mxu0 0.0
      %3069 = vmatprep.subr.mxu0 0.0
      %3070 = vmatpush2.msra.mxu0 0.0
      %3071 = vmatprep.subr.mxu0 0.0
      %3072 = vmatpush2.msra.mxu0 0.0
      %3073 = vmatprep.subr.mxu0 0.0
      %3074 = vmatpush2.msra.mxu0 0.0
      %3075 = vmatprep.subr.mxu0 0.0
      %3076 = vmatpush2.msra.mxu0 0.0
      %3077 = vmatprep.subr.mxu0 0.0
      %3078 = vmatpush2.msra.mxu0 0.0
      %3079 = vmatprep.subr.mxu0 0.0
      %3080 = vmatpush2.msra.mxu0 0.0
      %3081 = vmatprep.subr.mxu0 0.0
      %3082 = vmatpush2.msra.mxu0 0.0
      %3083 = vmatprep.subr.mxu0 0.0
      %3084 = vmatpush2.msra.mxu0 0.0
      %3085 = vmatprep.subr.mxu0 0.0
      %3086 = vmatpush2.msra.mxu0 0.0
      %3087 = vmatprep.subr.mxu0 0.0
      %3088 = vmatpush2.msra.mxu0 0.0
      %3089 = vmatprep.subr.mxu0 0.0
      %3090 = vmatpush2.msra.mxu0 0.0
      %3091 = vmatprep.subr.mxu0 0.0
      %3092 = vmatpush2.msra.mxu0 0.0
      %3093 = vmatprep.mubr.f32.mxu0 0.0
      %3094 = vmatmul.mubr.f32.gmra.mxu0 %v3027
      %v3095 = vpop.f32.mrf.mxu0
      %v3096 = vadd.f32 %v3023, %v3095
      %v3097 = vpop.f32.mrf.mxu0
      %3098 = vdwg.mxu0
      %v3099 = vtanh.pop %v3096
      %3100 = vst.msk [vmem:[#allocation7] sm:$0xff] %vm372, %v3099
    $region33: #{tpu_custom_call.1} parent=1 // pred_fallthru
      _
    // Predicated region
    $region34: #{tpu_custom_call.1} parent=1 // pred_check
      _
    $region35: #{tpu_custom_call.1} parent=1 // pred_check_branch
      %3102 = sbr.rel (0) target = $region37
    $region36: #{tpu_custom_call.1} parent=1 // pred_region
      %s3104 = ssub.s32 128, 128
      %3105 = vsyncadd [#allocation8], %s3104
      %s3107 = sshll.u32 [#allocation7], 4
      %s3108 = int_to_ptr.vmem [resolvable:$true] %s3107
      %3110 = dma.vmem_to_hbm [thread:$0]  %s3108, 128, %s6, [#allocation8]
    $region37: #{tpu_custom_call.1} parent=1 // pred_fallthru
      _
    // Predicated region
    $region38: #{tpu_custom_call.1} parent=1 // pred_check
      _
    $region39: #{tpu_custom_call.1} parent=1 // pred_check_branch
      %3112 = sbr.rel (0) target = $region41
    $region40: #{tpu_custom_call.1} parent=1 // pred_region
      %s3114 = ssub.s32 128, 128
      %3115 = vsyncadd [#allocation10], %s3114
      %s3117 = sshll.u32 [#allocation9], 4
      %s3118 = int_to_ptr.vmem [resolvable:$true] %s3117
      %3120 = dma.vmem_to_hbm [thread:$0]  %s3118, 128, %s7, [#allocation10]
    $region41: #{tpu_custom_call.1} parent=1 // pred_fallthru
      _
    // Predicated region
    $region42: #{tpu_custom_call.1} parent=1 // pred_check
      _
    $region43: #{tpu_custom_call.1} parent=1 // pred_check_branch
      %3122 = sbr.rel (0) target = $region45
    $region44: #{tpu_custom_call.1} parent=1 // pred_region
      %3123 = dma.done [#allocation8], 128
    $region45: #{tpu_custom_call.1} parent=1 // pred_fallthru
      _
    // Predicated region
    $region46: #{tpu_custom_call.1} parent=1 // pred_check
      _
    $region47: #{tpu_custom_call.1} parent=1 // pred_check_branch
      %3125 = sbr.rel (0) target = $region49
    $region48: #{tpu_custom_call.1} parent=1 // pred_region
      %3126 = dma.done [#allocation10], 128
    $region49: #{tpu_custom_call.1} parent=1 // pred_fallthru
      _
    %3127 = vsyncpa [#allocation8], 1
    %3128 = vsyncpa [#allocation10], 1

</llo_original>
